<compile_context>
chip_gen: v7x
topology: tpu7x:2x2x1
jax: 0.10.0
libtpu: 0.0.40
codegen_flags: <defaults>
</compile_context>

<pallas_src>
import functools

import jax
import jax.numpy as jnp
from jax.experimental import pallas as pl
from jax.experimental.pallas import tpu as pltpu


def _layernorm(x, gamma, beta, eps):
    # Same math as torch.nn.LayerNorm (biased variance); shared by the kernel
    # and the pure-JAX reference so numerics line up.
    mu = jnp.mean(x, axis=-1, keepdims=True)
    var = jnp.mean((x - mu) ** 2, axis=-1, keepdims=True)
    return (x - mu) * jax.lax.rsqrt(var + eps) * gamma + beta


def _crate_net_kernel(x_ref, ln1g_ref, ln1b_ref, wqkv_ref, wout_ref, bout_ref,
                      ln2g_ref, ln2b_ref, wff_ref, o_ref,
                      carry_scr, qkv_scr, hout_scr,
                      *, heads, dim_head, scale, step_size, lambd, eps,
                      matmul_dtype):
    # Grid = (batch, layer).  carry_scr holds the running activation for the
    # current batch element across the (sequential, "arbitrary") layer axis.
    layer = pl.program_id(1)
    n_layers = pl.num_programs(1)
    md = matmul_dtype

    @pl.when(layer == 0)
    def _load_activation():
        carry_scr[...] = x_ref[0].astype(jnp.float32)

    xb = carry_scr[...]                                            # (N, D) f32

    # ---- attention sublayer: grad_x = to_out(attn(LN(x))) + x --------------
    y = _layernorm(xb, ln1g_ref[0], ln1b_ref[0], eps)              # (N, D)
    qkv_scr[...] = jnp.dot(y.astype(md), wqkv_ref[0].astype(md),
                           preferred_element_type=jnp.float32)     # (N, inner)

    # Static head loop with static lane offsets; every per-head temporary dies
    # at the scratch store, so live ranges stay bounded.  The output
    # projection happens once, after the loop, with K = inner (fills the MXU).
    for h in range(heads):
        lo = h * dim_head
        wh = qkv_scr[:, lo:lo + dim_head]                          # (N, dh)
        wh_m = wh.astype(md)
        dots = jax.lax.dot_general(                                # (N, N)
            (wh * scale).astype(md), wh_m, (((1,), (1,)), ((), ())),
            preferred_element_type=jnp.float32)
        m = jnp.max(dots, axis=-1, keepdims=True)
        p = jnp.exp(dots - m)
        denom = jnp.sum(p, axis=-1, keepdims=True)
        oh = jnp.dot(p.astype(md), wh_m,
                     preferred_element_type=jnp.float32)           # (N, dh)
        # Deferred softmax normalization on the small operand (EUP reciprocal).
        hout_scr[:, lo:lo + dim_head] = oh * pl.reciprocal(denom, approx=True)

    attn_out = jnp.dot(hout_scr[...].astype(md), wout_ref[0].astype(md),
                       preferred_element_type=jnp.float32) + bout_ref[0]
    grad_x = attn_out + xb                                         # (N, D)

    # ---- ISTA feed-forward sublayer: x = relu(z + upd) + grad_x ------------
    z = _layernorm(grad_x, ln2g_ref[0], ln2b_ref[0], eps)          # (N, D)
    w = wff_ref[0].astype(md)                                      # (D, D) torch layout
    x1 = jax.lax.dot_general(z.astype(md), w, (((1,), (1,)), ((), ())),
                             preferred_element_type=jnp.float32)   # z @ W^T
    # step*(z@W - x1@W) == step*((z - x1)@W): one D×D matmul instead of two.
    upd = (step_size * jnp.dot((z - x1).astype(md), w,
                               preferred_element_type=jnp.float32)
           - step_size * lambd)
    x_new = jnp.maximum(z + upd, 0.0) + grad_x

    carry_scr[...] = x_new

    @pl.when(layer == n_layers - 1)
    def _store_output():
        o_ref[0] = x_new.astype(o_ref.dtype)


def crate_forward_pallas(x, params, *, heads, dim_head, ista=0.1, lambd=0.1,
                         eps=1e-5, matmul_dtype=jnp.float32):
    """Pallas implementation of CRATE.forward (eval mode, dropout=0)."""
    B, N, D = x.shape
    depth = len(params)
    inner = heads * dim_head
    scale = float(dim_head) ** -0.5

    # Stack per-layer weights along a leading depth axis so the depth grid
    # axis can index them (streamed / double-buffered per layer).
    stk = {k: jnp.stack([p[k] for p in params]) for k in params[0]}

    kernel = functools.partial(
        _crate_net_kernel, heads=heads, dim_head=dim_head, scale=scale,
        step_size=ista, lambd=lambd, eps=eps, matmul_dtype=matmul_dtype)

    x_spec = pl.BlockSpec((1, N, D), lambda b, l: (b, 0, 0))
    vec_spec = pl.BlockSpec((1, 1, D), lambda b, l: (l, 0, 0))

    # Explicit VMEM budget (v5e default scoped limit is 16 MiB; v7x physical
    # VMEM is 64 MiB) — footprint estimate with generous headroom.
    isz = jnp.dtype(x.dtype).itemsize
    est = (4 * N * D * isz                                   # in/out blocks, 2-buf
           + 2 * 4 * (2 * D * inner + D * D + 5 * D)         # weights, 2-buf
           + 4 * (N * D + 2 * N * inner)                     # scratches
           + 4 * (N * N + 4 * N * D))                        # transients
    vmem_limit = int(min(64 * 2**20, max(16 * 2**20, 2 * est)))

    return pl.pallas_call(
        kernel,
        out_shape=jax.ShapeDtypeStruct((B, N, D), x.dtype),
        grid_spec=pltpu.PrefetchScalarGridSpec(
            num_scalar_prefetch=0,
            grid=(B, depth),
            in_specs=[
                x_spec,                                              # x
                vec_spec, vec_spec,                                  # ln1 g/b
                pl.BlockSpec((1, D, inner), lambda b, l: (l, 0, 0)),  # W_qkv^T
                pl.BlockSpec((1, inner, D), lambda b, l: (l, 0, 0)),  # W_out^T
                vec_spec,                                            # b_out
                vec_spec, vec_spec,                                  # ln2 g/b
                pl.BlockSpec((1, D, D), lambda b, l: (l, 0, 0)),      # W_ff
            ],
            out_specs=x_spec,
            scratch_shapes=[
                pltpu.VMEM((N, D), jnp.float32),        # activation carry
                pltpu.VMEM((N, inner), jnp.float32),    # qkv projection
                pltpu.VMEM((N, inner), jnp.float32),    # concatenated head outs
            ],
        ),
        compiler_params=pltpu.CompilerParams(
            dimension_semantics=("parallel", "arbitrary"),
            vmem_limit_bytes=vmem_limit),
    )(x, stk["ln1_g"], stk["ln1_b"], stk["wqkv_t"], stk["wout_t"], stk["bout"],
      stk["ln2_g"], stk["ln2_b"], stk["wff"])


def crate_forward_ref(x, params, *, heads, dim_head, ista=0.1, lambd=0.1,
                      eps=1e-5):
    """Pure-JAX reference mirroring the PyTorch module exactly."""
    scale = float(dim_head) ** -0.5
    for p in params:
        y = _layernorm(x, p["ln1_g"], p["ln1_b"], eps)
        qkv = y @ p["wqkv_t"]                                    # (B, N, inner)
        B, N, _ = qkv.shape
        w = qkv.reshape(B, N, heads, dim_head).transpose(0, 2, 1, 3)  # b h n d
        dots = jnp.einsum("bhnd,bhmd->bhnm", w, w) * scale
        attn = jax.nn.softmax(dots, axis=-1)
        out = jnp.einsum("bhnm,bhmd->bhnd", attn, w)
        out = out.transpose(0, 2, 1, 3).reshape(B, N, heads * dim_head)
        grad_x = out @ p["wout_t"] + p["bout"] + x
        z = _layernorm(grad_x, p["ln2_g"], p["ln2_b"], eps)
        wff = p["wff"]
        x1 = z @ wff.T
        upd = ista * (z @ wff - x1 @ wff) - ista * lambd
        x = jax.nn.relu(z + upd) + grad_x
    return x


def init_crate_params(key, *, dim, depth, heads, dim_head):
    inner = heads * dim_head
    params = []
    for _ in range(depth):
        key, k1, k2, k3, k4 = jax.random.split(key, 5)
        bq = 1.0 / float(dim) ** 0.5
        wqkv = jax.random.uniform(k1, (inner, dim), jnp.float32, -bq, bq)
        bo = 1.0 / float(inner) ** 0.5
        wout = jax.random.uniform(k2, (dim, inner), jnp.float32, -bo, bo)
        bout = jax.random.uniform(k3, (1, dim), jnp.float32, -bo, bo)
        bk = (6.0 / float(dim)) ** 0.5          # ~kaiming_uniform bound
        wff = jax.random.uniform(k4, (dim, dim), jnp.float32, -bk, bk)
        params.append(dict(
            ln1_g=jnp.ones((1, dim), jnp.float32),
            ln1_b=jnp.zeros((1, dim), jnp.float32),
            wqkv_t=jnp.transpose(wqkv),       # (dim, inner)
            wout_t=jnp.transpose(wout),       # (inner, dim)
            bout=bout,                        # (1, dim)
            ln2_g=jnp.ones((1, dim), jnp.float32),
            ln2_b=jnp.zeros((1, dim), jnp.float32),
            wff=wff,                          # (dim, dim) torch layout
        ))
    return params


if __name__ == "__main__":
    # Small shapes consistent with the module: dim=32, heads=4, dim_head=8
    # (inner_dim=32), depth=2, batch=2, seq=8.
    B, N, D = 2, 8, 32
    heads, dim_head, depth = 4, 8, 2

    key = jax.random.PRNGKey(0)
    kx, kp = jax.random.split(key)
    x = jax.random.normal(kx, (B, N, D), dtype=jnp.float32)
    params = init_crate_params(kp, dim=D, depth=depth, heads=heads,
                               dim_head=dim_head)

    out = crate_forward_pallas(x, params, heads=heads, dim_head=dim_head)
    out = jax.block_until_ready(out)

    ref = crate_forward_ref(x, params, heads=heads, dim_head=dim_head)
    assert out.shape == (B, N, D)
    err = float(jnp.max(jnp.abs(out - ref)))
    # Tolerance covers the EUP approximate reciprocal (deferred softmax
    # normalization) plus FP reassociation from the fused-matmul refactors.
    assert jnp.allclose(out, ref, atol=5e-3, rtol=5e-3), f"max abs err={err}"
    print("KERNEL_OK")
</pallas_src>

<mosaic_0001>
module attributes {stable_mosaic.version = 11 : i64} {
  func.func @_crate_net_kernel(%arg0: i32, %arg1: i32, %arg2: memref<1x8x32xf32, #tpu.memory_space<vmem>>, %arg3: memref<1x1x32xf32, #tpu.memory_space<vmem>>, %arg4: memref<1x1x32xf32, #tpu.memory_space<vmem>>, %arg5: memref<1x32x32xf32, #tpu.memory_space<vmem>>, %arg6: memref<1x32x32xf32, #tpu.memory_space<vmem>>, %arg7: memref<1x1x32xf32, #tpu.memory_space<vmem>>, %arg8: memref<1x1x32xf32, #tpu.memory_space<vmem>>, %arg9: memref<1x1x32xf32, #tpu.memory_space<vmem>>, %arg10: memref<1x32x32xf32, #tpu.memory_space<vmem>>, %arg11: memref<1x8x32xf32, #tpu.memory_space<vmem>>, %arg12: memref<8x32xf32, #tpu.memory_space<vmem>>, %arg13: memref<8x32xf32, #tpu.memory_space<vmem>>, %arg14: memref<8x32xf32, #tpu.memory_space<vmem>>) attributes {dimension_semantics = [#tpu.dimension_semantics<parallel>, #tpu.dimension_semantics<arbitrary>], iteration_bounds = array<i64: 2, 2>, scalar_prefetch = 0 : i64, scratch_operands = 3 : i64, tpu.core_type = #tpu.core_type<tc>, window_params = [{transform_indices = @transform_0, window_bounds = array<i64: 1, 8, 32>}, {transform_indices = @transform_1, window_bounds = array<i64: 1, 1, 32>}, {transform_indices = @transform_2, window_bounds = array<i64: 1, 1, 32>}, {transform_indices = @transform_3, window_bounds = array<i64: 1, 32, 32>}, {transform_indices = @transform_4, window_bounds = array<i64: 1, 32, 32>}, {transform_indices = @transform_5, window_bounds = array<i64: 1, 1, 32>}, {transform_indices = @transform_6, window_bounds = array<i64: 1, 1, 32>}, {transform_indices = @transform_7, window_bounds = array<i64: 1, 1, 32>}, {transform_indices = @transform_8, window_bounds = array<i64: 1, 32, 32>}, {transform_indices = @transform_9, window_bounds = array<i64: 1, 8, 32>}]} {
    %c0_i32 = arith.constant 0 : i32
    %0 = arith.cmpi eq, %arg1, %c0_i32 : i32
    %1 = arith.extui %0 : i1 to i32
    %c0_i32_0 = arith.constant 0 : i32
    %2 = arith.cmpi ne, %1, %c0_i32_0 : i32
    scf.if %2 {
      %c0_82 = arith.constant 0 : index
      %c0_83 = arith.constant 0 : index
      %c0_84 = arith.constant 0 : index
      %150 = vector.load %arg2[%c0_82, %c0_83, %c0_84] : memref<1x8x32xf32, #tpu.memory_space<vmem>>, vector<1x8x32xf32>
      %151 = vector.shape_cast %150 : vector<1x8x32xf32> to vector<8x32xf32>
      %c0_85 = arith.constant 0 : index
      %c0_86 = arith.constant 0 : index
      %152 = vector.load %arg12[%c0_85, %c0_86] : memref<8x32xf32, #tpu.memory_space<vmem>>, vector<8x32xf32>
      tpu.vector_store %arg12[%c0_85, %c0_86], %151 {strides = array<i32>} : memref<8x32xf32, #tpu.memory_space<vmem>>, vector<8x32xf32>,
    } else {
    }
    %c0 = arith.constant 0 : index
    %c0_1 = arith.constant 0 : index
    %3 = vector.load %arg12[%c0, %c0_1] : memref<8x32xf32, #tpu.memory_space<vmem>>, vector<8x32xf32>
    %c0_2 = arith.constant 0 : index
    %c0_3 = arith.constant 0 : index
    %c0_4 = arith.constant 0 : index
    %4 = vector.load %arg3[%c0_2, %c0_3, %c0_4] : memref<1x1x32xf32, #tpu.memory_space<vmem>>, vector<1x1x32xf32>
    %5 = vector.shape_cast %4 : vector<1x1x32xf32> to vector<1x32xf32>
    %c0_5 = arith.constant 0 : index
    %c0_6 = arith.constant 0 : index
    %c0_7 = arith.constant 0 : index
    %6 = vector.load %arg4[%c0_5, %c0_6, %c0_7] : memref<1x1x32xf32, #tpu.memory_space<vmem>>, vector<1x1x32xf32>
    %7 = vector.shape_cast %6 : vector<1x1x32xf32> to vector<1x32xf32>
    %cst = arith.constant dense<0.000000e+00> : vector<8xf32>
    %8 = vector.multi_reduction <add>, %3, %cst [1] : vector<8x32xf32> to vector<8xf32>
    %9 = vector.shape_cast %8 : vector<8xf32> to vector<8x1xf32>
    %cst_8 = arith.constant 3.200000e+01 : f32
    %10 = vector.broadcast %cst_8 : f32 to vector<8x1xf32>
    %11 = arith.divf %9, %10 : vector<8x1xf32>
    %12 = vector.broadcast %11 : vector<8x1xf32> to vector<8x32xf32>
    %13 = arith.subf %3, %12 : vector<8x32xf32>
    %14 = arith.mulf %13, %13 : vector<8x32xf32>
    %cst_9 = arith.constant dense<0.000000e+00> : vector<8xf32>
    %15 = vector.multi_reduction <add>, %14, %cst_9 [1] : vector<8x32xf32> to vector<8xf32>
    %16 = vector.shape_cast %15 : vector<8xf32> to vector<8x1xf32>
    %cst_10 = arith.constant 3.200000e+01 : f32
    %17 = vector.broadcast %cst_10 : f32 to vector<8x1xf32>
    %18 = arith.divf %16, %17 : vector<8x1xf32>
    %19 = vector.broadcast %11 : vector<8x1xf32> to vector<8x32xf32>
    %20 = arith.subf %3, %19 : vector<8x32xf32>
    %cst_11 = arith.constant 9.99999974E-6 : f32
    %21 = vector.broadcast %cst_11 : f32 to vector<8x1xf32>
    %22 = arith.addf %18, %21 : vector<8x1xf32>
    %23 = math.rsqrt %22 : vector<8x1xf32>
    %24 = vector.broadcast %23 : vector<8x1xf32> to vector<8x32xf32>
    %25 = arith.mulf %20, %24 : vector<8x32xf32>
    %26 = vector.broadcast %5 : vector<1x32xf32> to vector<8x32xf32>
    %27 = arith.mulf %25, %26 : vector<8x32xf32>
    %28 = vector.broadcast %7 : vector<1x32xf32> to vector<8x32xf32>
    %29 = arith.addf %27, %28 : vector<8x32xf32>
    %c0_12 = arith.constant 0 : index
    %c0_13 = arith.constant 0 : index
    %c0_14 = arith.constant 0 : index
    %30 = vector.load %arg5[%c0_12, %c0_13, %c0_14] : memref<1x32x32xf32, #tpu.memory_space<vmem>>, vector<1x32x32xf32>
    %31 = vector.shape_cast %30 : vector<1x32x32xf32> to vector<32x32xf32>
    %cst_15 = arith.constant dense<0.000000e+00> : vector<8x32xf32>
    %32 = tpu.matmul %29, %31, %cst_15 {dimension_numbers = #tpu.dot_dimension_numbers<[1], [0], [0], [1], [0, 0, 1, 1], [], []>} : vector<8x32xf32>, vector<32x32xf32>, vector<8x32xf32> -> vector<8x32xf32>
    %c0_16 = arith.constant 0 : index
    %c0_17 = arith.constant 0 : index
    %33 = vector.load %arg13[%c0_16, %c0_17] : memref<8x32xf32, #tpu.memory_space<vmem>>, vector<8x32xf32>
    tpu.vector_store %arg13[%c0_16, %c0_17], %32 {strides = array<i32>} : memref<8x32xf32, #tpu.memory_space<vmem>>, vector<8x32xf32>,
    %c0_18 = arith.constant 0 : index
    %c0_19 = arith.constant 0 : index
    %34 = vector.load %arg13[%c0_18, %c0_19] : memref<8x32xf32, #tpu.memory_space<vmem>>, vector<8x8xf32>
    %cst_20 = arith.constant 0.353553385 : f32
    %35 = vector.broadcast %cst_20 : f32 to vector<8x8xf32>
    %36 = arith.mulf %34, %35 : vector<8x8xf32>
    %cst_21 = arith.constant dense<0.000000e+00> : vector<8x8xf32>
    %37 = tpu.matmul %36, %34, %cst_21 {dimension_numbers = #tpu.dot_dimension_numbers<[1], [1], [0], [0], [0, 0, 1, 0], [], []>} : vector<8x8xf32>, vector<8x8xf32>, vector<8x8xf32> -> vector<8x8xf32>
    %cst_22 = arith.constant dense<0xFF800000> : vector<8xf32>
    %38 = vector.multi_reduction <maximumf>, %37, %cst_22 [1] : vector<8x8xf32> to vector<8xf32>
    %39 = vector.shape_cast %38 : vector<8xf32> to vector<8x1xf32>
    %40 = vector.broadcast %39 : vector<8x1xf32> to vector<8x8xf32>
    %41 = arith.subf %37, %40 : vector<8x8xf32>
    %42 = math.exp %41 : vector<8x8xf32>
    %cst_23 = arith.constant dense<0.000000e+00> : vector<8xf32>
    %43 = vector.multi_reduction <add>, %42, %cst_23 [1] : vector<8x8xf32> to vector<8xf32>
    %44 = vector.shape_cast %43 : vector<8xf32> to vector<8x1xf32>
    %cst_24 = arith.constant dense<0.000000e+00> : vector<8x8xf32>
    %45 = tpu.matmul %42, %34, %cst_24 {dimension_numbers = #tpu.dot_dimension_numbers<[1], [0], [0], [1], [0, 0, 1, 1], [], []>} : vector<8x8xf32>, vector<8x8xf32>, vector<8x8xf32> -> vector<8x8xf32>
    %46 = tpu.reciprocal %44 {approx = true} : vector<8x1xf32> -> vector<8x1xf32>
    %47 = vector.broadcast %46 : vector<8x1xf32> to vector<8x8xf32>
    %48 = arith.mulf %45, %47 : vector<8x8xf32>
    %c0_25 = arith.constant 0 : index
    %c0_26 = arith.constant 0 : index
    %49 = vector.load %arg14[%c0_25, %c0_26] : memref<8x32xf32, #tpu.memory_space<vmem>>, vector<8x8xf32>
    tpu.vector_store %arg14[%c0_25, %c0_26], %48 {strides = array<i32>} : memref<8x32xf32, #tpu.memory_space<vmem>>, vector<8x8xf32>,
    %c0_27 = arith.constant 0 : index
    %c8 = arith.constant 8 : index
    %50 = vector.load %arg13[%c0_27, %c8] : memref<8x32xf32, #tpu.memory_space<vmem>>, vector<8x8xf32>
    %cst_28 = arith.constant 0.353553385 : f32
    %51 = vector.broadcast %cst_28 : f32 to vector<8x8xf32>
    %52 = arith.mulf %50, %51 : vector<8x8xf32>
    %cst_29 = arith.constant dense<0.000000e+00> : vector<8x8xf32>
    %53 = tpu.matmul %52, %50, %cst_29 {dimension_numbers = #tpu.dot_dimension_numbers<[1], [1], [0], [0], [0, 0, 1, 0], [], []>} : vector<8x8xf32>, vector<8x8xf32>, vector<8x8xf32> -> vector<8x8xf32>
    %cst_30 = arith.constant dense<0xFF800000> : vector<8xf32>
    %54 = vector.multi_reduction <maximumf>, %53, %cst_30 [1] : vector<8x8xf32> to vector<8xf32>
    %55 = vector.shape_cast %54 : vector<8xf32> to vector<8x1xf32>
    %56 = vector.broadcast %55 : vector<8x1xf32> to vector<8x8xf32>
    %57 = arith.subf %53, %56 : vector<8x8xf32>
    %58 = math.exp %57 : vector<8x8xf32>
    %cst_31 = arith.constant dense<0.000000e+00> : vector<8xf32>
    %59 = vector.multi_reduction <add>, %58, %cst_31 [1] : vector<8x8xf32> to vector<8xf32>
    %60 = vector.shape_cast %59 : vector<8xf32> to vector<8x1xf32>
    %cst_32 = arith.constant dense<0.000000e+00> : vector<8x8xf32>
    %61 = tpu.matmul %58, %50, %cst_32 {dimension_numbers = #tpu.dot_dimension_numbers<[1], [0], [0], [1], [0, 0, 1, 1], [], []>} : vector<8x8xf32>, vector<8x8xf32>, vector<8x8xf32> -> vector<8x8xf32>
    %62 = tpu.reciprocal %60 {approx = true} : vector<8x1xf32> -> vector<8x1xf32>
    %63 = vector.broadcast %62 : vector<8x1xf32> to vector<8x8xf32>
    %64 = arith.mulf %61, %63 : vector<8x8xf32>
    %c0_33 = arith.constant 0 : index
    %c8_34 = arith.constant 8 : index
    %65 = vector.load %arg14[%c0_33, %c8_34] : memref<8x32xf32, #tpu.memory_space<vmem>>, vector<8x8xf32>
    tpu.vector_store %arg14[%c0_33, %c8_34], %64 {strides = array<i32>} : memref<8x32xf32, #tpu.memory_space<vmem>>, vector<8x8xf32>,
    %c0_35 = arith.constant 0 : index
    %c16 = arith.constant 16 : index
    %66 = vector.load %arg13[%c0_35, %c16] : memref<8x32xf32, #tpu.memory_space<vmem>>, vector<8x8xf32>
    %cst_36 = arith.constant 0.353553385 : f32
    %67 = vector.broadcast %cst_36 : f32 to vector<8x8xf32>
    %68 = arith.mulf %66, %67 : vector<8x8xf32>
    %cst_37 = arith.constant dense<0.000000e+00> : vector<8x8xf32>
    %69 = tpu.matmul %68, %66, %cst_37 {dimension_numbers = #tpu.dot_dimension_numbers<[1], [1], [0], [0], [0, 0, 1, 0], [], []>} : vector<8x8xf32>, vector<8x8xf32>, vector<8x8xf32> -> vector<8x8xf32>
    %cst_38 = arith.constant dense<0xFF800000> : vector<8xf32>
    %70 = vector.multi_reduction <maximumf>, %69, %cst_38 [1] : vector<8x8xf32> to vector<8xf32>
    %71 = vector.shape_cast %70 : vector<8xf32> to vector<8x1xf32>
    %72 = vector.broadcast %71 : vector<8x1xf32> to vector<8x8xf32>
    %73 = arith.subf %69, %72 : vector<8x8xf32>
    %74 = math.exp %73 : vector<8x8xf32>
    %cst_39 = arith.constant dense<0.000000e+00> : vector<8xf32>
    %75 = vector.multi_reduction <add>, %74, %cst_39 [1] : vector<8x8xf32> to vector<8xf32>
    %76 = vector.shape_cast %75 : vector<8xf32> to vector<8x1xf32>
    %cst_40 = arith.constant dense<0.000000e+00> : vector<8x8xf32>
    %77 = tpu.matmul %74, %66, %cst_40 {dimension_numbers = #tpu.dot_dimension_numbers<[1], [0], [0], [1], [0, 0, 1, 1], [], []>} : vector<8x8xf32>, vector<8x8xf32>, vector<8x8xf32> -> vector<8x8xf32>
    %78 = tpu.reciprocal %76 {approx = true} : vector<8x1xf32> -> vector<8x1xf32>
    %79 = vector.broadcast %78 : vector<8x1xf32> to vector<8x8xf32>
    %80 = arith.mulf %77, %79 : vector<8x8xf32>
    %c0_41 = arith.constant 0 : index
    %c16_42 = arith.constant 16 : index
    %81 = vector.load %arg14[%c0_41, %c16_42] : memref<8x32xf32, #tpu.memory_space<vmem>>, vector<8x8xf32>
    tpu.vector_store %arg14[%c0_41, %c16_42], %80 {strides = array<i32>} : memref<8x32xf32, #tpu.memory_space<vmem>>, vector<8x8xf32>,
    %c0_43 = arith.constant 0 : index
    %c24 = arith.constant 24 : index
    %82 = vector.load %arg13[%c0_43, %c24] : memref<8x32xf32, #tpu.memory_space<vmem>>, vector<8x8xf32>
    %cst_44 = arith.constant 0.353553385 : f32
    %83 = vector.broadcast %cst_44 : f32 to vector<8x8xf32>
    %84 = arith.mulf %82, %83 : vector<8x8xf32>
    %cst_45 = arith.constant dense<0.000000e+00> : vector<8x8xf32>
    %85 = tpu.matmul %84, %82, %cst_45 {dimension_numbers = #tpu.dot_dimension_numbers<[1], [1], [0], [0], [0, 0, 1, 0], [], []>} : vector<8x8xf32>, vector<8x8xf32>, vector<8x8xf32> -> vector<8x8xf32>
    %cst_46 = arith.constant dense<0xFF800000> : vector<8xf32>
    %86 = vector.multi_reduction <maximumf>, %85, %cst_46 [1] : vector<8x8xf32> to vector<8xf32>
    %87 = vector.shape_cast %86 : vector<8xf32> to vector<8x1xf32>
    %88 = vector.broadcast %87 : vector<8x1xf32> to vector<8x8xf32>
    %89 = arith.subf %85, %88 : vector<8x8xf32>
    %90 = math.exp %89 : vector<8x8xf32>
    %cst_47 = arith.constant dense<0.000000e+00> : vector<8xf32>
    %91 = vector.multi_reduction <add>, %90, %cst_47 [1] : vector<8x8xf32> to vector<8xf32>
    %92 = vector.shape_cast %91 : vector<8xf32> to vector<8x1xf32>
    %cst_48 = arith.constant dense<0.000000e+00> : vector<8x8xf32>
    %93 = tpu.matmul %90, %82, %cst_48 {dimension_numbers = #tpu.dot_dimension_numbers<[1], [0], [0], [1], [0, 0, 1, 1], [], []>} : vector<8x8xf32>, vector<8x8xf32>, vector<8x8xf32> -> vector<8x8xf32>
    %94 = tpu.reciprocal %92 {approx = true} : vector<8x1xf32> -> vector<8x1xf32>
    %95 = vector.broadcast %94 : vector<8x1xf32> to vector<8x8xf32>
    %96 = arith.mulf %93, %95 : vector<8x8xf32>
    %c0_49 = arith.constant 0 : index
    %c24_50 = arith.constant 24 : index
    %97 = vector.load %arg14[%c0_49, %c24_50] : memref<8x32xf32, #tpu.memory_space<vmem>>, vector<8x8xf32>
    tpu.vector_store %arg14[%c0_49, %c24_50], %96 {strides = array<i32>} : memref<8x32xf32, #tpu.memory_space<vmem>>, vector<8x8xf32>,
    %c0_51 = arith.constant 0 : index
    %c0_52 = arith.constant 0 : index
    %98 = vector.load %arg14[%c0_51, %c0_52] : memref<8x32xf32, #tpu.memory_space<vmem>>, vector<8x32xf32>
    %c0_53 = arith.constant 0 : index
    %c0_54 = arith.constant 0 : index
    %c0_55 = arith.constant 0 : index
    %99 = vector.load %arg6[%c0_53, %c0_54, %c0_55] : memref<1x32x32xf32, #tpu.memory_space<vmem>>, vector<1x32x32xf32>
    %100 = vector.shape_cast %99 : vector<1x32x32xf32> to vector<32x32xf32>
    %cst_56 = arith.constant dense<0.000000e+00> : vector<8x32xf32>
    %101 = tpu.matmul %98, %100, %cst_56 {dimension_numbers = #tpu.dot_dimension_numbers<[1], [0], [0], [1], [0, 0, 1, 1], [], []>} : vector<8x32xf32>, vector<32x32xf32>, vector<8x32xf32> -> vector<8x32xf32>
    %c0_57 = arith.constant 0 : index
    %c0_58 = arith.constant 0 : index
    %c0_59 = arith.constant 0 : index
    %102 = vector.load %arg7[%c0_57, %c0_58, %c0_59] : memref<1x1x32xf32, #tpu.memory_space<vmem>>, vector<1x1x32xf32>
    %103 = vector.shape_cast %102 : vector<1x1x32xf32> to vector<1x32xf32>
    %104 = vector.broadcast %103 : vector<1x32xf32> to vector<8x32xf32>
    %105 = arith.addf %101, %104 : vector<8x32xf32>
    %106 = arith.addf %105, %3 : vector<8x32xf32>
    %c0_60 = arith.constant 0 : index
    %c0_61 = arith.constant 0 : index
    %c0_62 = arith.constant 0 : index
    %107 = vector.load %arg8[%c0_60, %c0_61, %c0_62] : memref<1x1x32xf32, #tpu.memory_space<vmem>>, vector<1x1x32xf32>
    %108 = vector.shape_cast %107 : vector<1x1x32xf32> to vector<1x32xf32>
    %c0_63 = arith.constant 0 : index
    %c0_64 = arith.constant 0 : index
    %c0_65 = arith.constant 0 : index
    %109 = vector.load %arg9[%c0_63, %c0_64, %c0_65] : memref<1x1x32xf32, #tpu.memory_space<vmem>>, vector<1x1x32xf32>
    %110 = vector.shape_cast %109 : vector<1x1x32xf32> to vector<1x32xf32>
    %cst_66 = arith.constant dense<0.000000e+00> : vector<8xf32>
    %111 = vector.multi_reduction <add>, %106, %cst_66 [1] : vector<8x32xf32> to vector<8xf32>
    %112 = vector.shape_cast %111 : vector<8xf32> to vector<8x1xf32>
    %cst_67 = arith.constant 3.200000e+01 : f32
    %113 = vector.broadcast %cst_67 : f32 to vector<8x1xf32>
    %114 = arith.divf %112, %113 : vector<8x1xf32>
    %115 = vector.broadcast %114 : vector<8x1xf32> to vector<8x32xf32>
    %116 = arith.subf %106, %115 : vector<8x32xf32>
    %117 = arith.mulf %116, %116 : vector<8x32xf32>
    %cst_68 = arith.constant dense<0.000000e+00> : vector<8xf32>
    %118 = vector.multi_reduction <add>, %117, %cst_68 [1] : vector<8x32xf32> to vector<8xf32>
    %119 = vector.shape_cast %118 : vector<8xf32> to vector<8x1xf32>
    %cst_69 = arith.constant 3.200000e+01 : f32
    %120 = vector.broadcast %cst_69 : f32 to vector<8x1xf32>
    %121 = arith.divf %119, %120 : vector<8x1xf32>
    %122 = vector.broadcast %114 : vector<8x1xf32> to vector<8x32xf32>
    %123 = arith.subf %106, %122 : vector<8x32xf32>
    %cst_70 = arith.constant 9.99999974E-6 : f32
    %124 = vector.broadcast %cst_70 : f32 to vector<8x1xf32>
    %125 = arith.addf %121, %124 : vector<8x1xf32>
    %126 = math.rsqrt %125 : vector<8x1xf32>
    %127 = vector.broadcast %126 : vector<8x1xf32> to vector<8x32xf32>
    %128 = arith.mulf %123, %127 : vector<8x32xf32>
    %129 = vector.broadcast %108 : vector<1x32xf32> to vector<8x32xf32>
    %130 = arith.mulf %128, %129 : vector<8x32xf32>
    %131 = vector.broadcast %110 : vector<1x32xf32> to vector<8x32xf32>
    %132 = arith.addf %130, %131 : vector<8x32xf32>
    %c0_71 = arith.constant 0 : index
    %c0_72 = arith.constant 0 : index
    %c0_73 = arith.constant 0 : index
    %133 = vector.load %arg10[%c0_71, %c0_72, %c0_73] : memref<1x32x32xf32, #tpu.memory_space<vmem>>, vector<1x32x32xf32>
    %134 = vector.shape_cast %133 : vector<1x32x32xf32> to vector<32x32xf32>
    %cst_74 = arith.constant dense<0.000000e+00> : vector<8x32xf32>
    %135 = tpu.matmul %132, %134, %cst_74 {dimension_numbers = #tpu.dot_dimension_numbers<[1], [1], [0], [0], [0, 0, 1, 0], [], []>} : vector<8x32xf32>, vector<32x32xf32>, vector<8x32xf32> -> vector<8x32xf32>
    %136 = arith.subf %132, %135 : vector<8x32xf32>
    %cst_75 = arith.constant dense<0.000000e+00> : vector<8x32xf32>
    %137 = tpu.matmul %136, %134, %cst_75 {dimension_numbers = #tpu.dot_dimension_numbers<[1], [0], [0], [1], [0, 0, 1, 1], [], []>} : vector<8x32xf32>, vector<32x32xf32>, vector<8x32xf32> -> vector<8x32xf32>
    %cst_76 = arith.constant 1.000000e-01 : f32
    %138 = vector.broadcast %cst_76 : f32 to vector<8x32xf32>
    %139 = arith.mulf %138, %137 : vector<8x32xf32>
    %cst_77 = arith.constant 0.00999999977 : f32
    %140 = vector.broadcast %cst_77 : f32 to vector<8x32xf32>
    %141 = arith.subf %139, %140 : vector<8x32xf32>
    %142 = arith.addf %132, %141 : vector<8x32xf32>
    %cst_78 = arith.constant 0.000000e+00 : f32
    %143 = vector.broadcast %cst_78 : f32 to vector<8x32xf32>
    %144 = arith.maximumf %142, %143 : vector<8x32xf32>
    %145 = arith.addf %144, %106 : vector<8x32xf32>
    %c0_79 = arith.constant 0 : index
    %c0_80 = arith.constant 0 : index
    %146 = vector.load %arg12[%c0_79, %c0_80] : memref<8x32xf32, #tpu.memory_space<vmem>>, vector<8x32xf32>
    tpu.vector_store %arg12[%c0_79, %c0_80], %145 {strides = array<i32>} : memref<8x32xf32, #tpu.memory_space<vmem>>, vector<8x32xf32>,
    %c1_i32 = arith.constant 1 : i32
    %147 = arith.cmpi eq, %arg1, %c1_i32 : i32
    %148 = arith.extui %147 : i1 to i32
    %c0_i32_81 = arith.constant 0 : i32
    %149 = arith.cmpi ne, %148, %c0_i32_81 : i32
    scf.if %149 {
      %c0_82 = arith.constant 0 : index
      %c0_83 = arith.constant 0 : index
      %c0_84 = arith.constant 0 : index
      %150 = vector.load %arg11[%c0_82, %c0_83, %c0_84] : memref<1x8x32xf32, #tpu.memory_space<vmem>>, vector<1x8x32xf32>
      %151 = vector.shape_cast %150 : vector<1x8x32xf32> to vector<8x32xf32>
      %152 = vector.shape_cast %145 : vector<8x32xf32> to vector<1x8x32xf32>
      tpu.vector_store %arg11[%c0_82, %c0_83, %c0_84], %152 {strides = array<i32>} : memref<1x8x32xf32, #tpu.memory_space<vmem>>, vector<1x8x32xf32>,
    } else {
    }
    return
  }
  func.func @transform_0(%arg0: i32, %arg1: i32) -> (i32, i32, i32) {
    %c0_i32 = arith.constant 0 : i32
    %c0_i32_0 = arith.constant 0 : i32
    %c0_i32_1 = arith.constant 0 : i32
    return %arg0, %c0_i32, %c0_i32_0 : i32, i32, i32
  }
  func.func @transform_1(%arg0: i32, %arg1: i32) -> (i32, i32, i32) {
    %c0_i32 = arith.constant 0 : i32
    %c0_i32_0 = arith.constant 0 : i32
    %c0_i32_1 = arith.constant 0 : i32
    return %arg1, %c0_i32, %c0_i32_0 : i32, i32, i32
  }
  func.func @transform_2(%arg0: i32, %arg1: i32) -> (i32, i32, i32) {
    %c0_i32 = arith.constant 0 : i32
    %c0_i32_0 = arith.constant 0 : i32
    %c0_i32_1 = arith.constant 0 : i32
    return %arg1, %c0_i32, %c0_i32_0 : i32, i32, i32
  }
  func.func @transform_3(%arg0: i32, %arg1: i32) -> (i32, i32, i32) {
    %c0_i32 = arith.constant 0 : i32
    %c0_i32_0 = arith.constant 0 : i32
    %c0_i32_1 = arith.constant 0 : i32
    return %arg1, %c0_i32, %c0_i32_0 : i32, i32, i32
  }
  func.func @transform_4(%arg0: i32, %arg1: i32) -> (i32, i32, i32) {
    %c0_i32 = arith.constant 0 : i32
    %c0_i32_0 = arith.constant 0 : i32
    %c0_i32_1 = arith.constant 0 : i32
    return %arg1, %c0_i32, %c0_i32_0 : i32, i32, i32
  }
  func.func @transform_5(%arg0: i32, %arg1: i32) -> (i32, i32, i32) {
    %c0_i32 = arith.constant 0 : i32
    %c0_i32_0 = arith.constant 0 : i32
    %c0_i32_1 = arith.constant 0 : i32
    return %arg1, %c0_i32, %c0_i32_0 : i32, i32, i32
  }
  func.func @transform_6(%arg0: i32, %arg1: i32) -> (i32, i32, i32) {
    %c0_i32 = arith.constant 0 : i32
    %c0_i32_0 = arith.constant 0 : i32
    %c0_i32_1 = arith.constant 0 : i32
    return %arg1, %c0_i32, %c0_i32_0 : i32, i32, i32
  }
  func.func @transform_7(%arg0: i32, %arg1: i32) -> (i32, i32, i32) {
    %c0_i32 = arith.constant 0 : i32
    %c0_i32_0 = arith.constant 0 : i32
    %c0_i32_1 = arith.constant 0 : i32
    return %arg1, %c0_i32, %c0_i32_0 : i32, i32, i32
  }
  func.func @transform_8(%arg0: i32, %arg1: i32) -> (i32, i32, i32) {
    %c0_i32 = arith.constant 0 : i32
    %c0_i32_0 = arith.constant 0 : i32
    %c0_i32_1 = arith.constant 0 : i32
    return %arg1, %c0_i32, %c0_i32_0 : i32, i32, i32
  }
  func.func @transform_9(%arg0: i32, %arg1: i32) -> (i32, i32, i32) {
    %c0_i32 = arith.constant 0 : i32
    %c0_i32_0 = arith.constant 0 : i32
    %c0_i32_1 = arith.constant 0 : i32
    return %arg0, %c0_i32, %c0_i32_0 : i32, i32, i32
  }
}

</mosaic_0001>

<llo_original>
// kernel: tpu_custom_call.1
$region0: #{tpu_custom_call.1}
  #allocation0 [shape = 'u32[]', space=smem, size = 0x4, offset = 0x4, fixed_abs, tag = 'smem constant byte address 0x4 - core index']
  #allocation1 [shape = 'u32[144,128]{1,0:T(1,128)}', space=vmem, size = 0x12000, scoped, tag = 'internal scratch']
  #allocation2 [shape = 'f32[8,32]{1,0:T(8,128)}', space=vmem, size = 0x1000, scoped, tag = 'scratch operand']
  #allocation3 [shape = 'f32[8,32]{1,0:T(8,128)}', space=vmem, size = 0x1000, scoped, tag = 'scratch operand']
  #allocation4 [shape = 'f32[8,32]{1,0:T(8,128)}', space=vmem, size = 0x1000, scoped, tag = 'scratch operand']
  %s0 = inlined_call_operand.hbm [shape: f32[2,8,32], index: 0, kind: input, shape index: {}]
  %s1 = inlined_call_operand.vmem [shape: f32[2,1,32], index: 1, kind: input, shape index: {}]
  %s2 = inlined_call_operand.vmem [shape: f32[2,1,32], index: 2, kind: input, shape index: {}]
  %s3 = inlined_call_operand.hbm [shape: f32[2,32,32], index: 3, kind: input, shape index: {}]
  %s4 = inlined_call_operand.hbm [shape: f32[2,32,32], index: 4, kind: input, shape index: {}]
  %s5 = inlined_call_operand.vmem [shape: f32[2,1,32], index: 5, kind: input, shape index: {}]
  %s6 = inlined_call_operand.vmem [shape: f32[2,1,32], index: 6, kind: input, shape index: {}]
  %s7 = inlined_call_operand.vmem [shape: f32[2,1,32], index: 7, kind: input, shape index: {}]
  %s8 = inlined_call_operand.hbm [shape: f32[2,32,32], index: 8, kind: input, shape index: {}]
  %s9 = inlined_call_operand.hbm [shape: f32[2,8,32], index: 9, kind: output, shape index: {}]
  %s10 = sld [smem:[#allocation0]]
  $region93: #{tpu_custom_call.1} parent=0
    _
  %s12 = ssub.s32 1, %s10
  %s13 = scalar_select 0, %s12, %s10
  $region1: #{tpu_custom_call.1} parent=0
    #allocation5 [shape = 'u8[8192]{0}', space=vmem, size = 0x2000, scoped, tag = 'input window, operand 0']
    #allocation6 [shape = 's32[2]{0}', space=sflag, size = 0x8, scoped, tag = 'scoped memory for tpu_custom_call.1']
    #allocation7 [shape = 's32[2]{0}', space=sflag, size = 0x8, scoped, tag = 'scoped memory for tpu_custom_call.1']
    #allocation8 [shape = 'u8[32768]{0}', space=vmem, size = 0x8000, scoped, tag = 'input window, operand 3']
    #allocation9 [shape = 's32[2]{0}', space=sflag, size = 0x8, scoped, tag = 'scoped memory for tpu_custom_call.1']
    #allocation10 [shape = 'u8[32768]{0}', space=vmem, size = 0x8000, scoped, tag = 'input window, operand 4']
    #allocation11 [shape = 'u8[32768]{0}', space=vmem, size = 0x8000, scoped, tag = 'input window, operand 8']
    #allocation12 [shape = 's32[2]{0}', space=sflag, size = 0x8, scoped, tag = 'scoped memory for tpu_custom_call.1']
    #allocation13 [shape = 'u8[8192]{0}', space=vmem, size = 0x2000, scoped, tag = 'output window, operand 0']
    %14 = vsyncpa [#allocation6], 0
    %s15 = scalar_lea.sflag [#allocation6], 1
    %16 = vsyncpa %s15, 0
    %17 = vsyncpa [#allocation9], 0
    %s18 = scalar_lea.sflag [#allocation9], 1
    %19 = vsyncpa %s18, 0
    %20 = vsyncpa [#allocation12], 0
    %s21 = scalar_lea.sflag [#allocation12], 1
    %22 = vsyncpa %s21, 0
    %23 = vsyncpa [#allocation7], 0
    %s24 = scalar_lea.sflag [#allocation7], 1
    %25 = vsyncpa %s24, 0
    loop: start=0, step=1, limit=6
    $region2: #{tpu_custom_call.1} parent=1 // loop_pre_header
      _
    $region3: #{tpu_custom_call.1} parent=1 // loop_header
      %s27 = sphi 0, %s31
      %p28 = scmp.ge.s32.totalorder %s27, 6
      %s34 = sphi 0, %s46
      %s35 = sphi 0, %s42
      %s36 = sphi 0, %s34
      %s37 = sphi 0, %s35
      %s38 = sphi 0, %s36
      %s39 = sphi 0, %s37
      %s49 = sphi 0, %s51
      %s52 = sphi 0, %s49
      %s53 = sphi 0, %s52
      %s69 = sphi 0, %s53
      %s75 = sphi 0, %s77
      %s78 = sphi 0, %s75
      %s79 = sphi 0, %s78
      %s95 = sphi 0, %s79
      %s101 = sphi 0, %s103
      %s104 = sphi 0, %s101
      %s105 = sphi 0, %s104
      %s121 = sphi 0, %s105
      %s127 = sphi 0, %s129
      %s130 = sphi 0, %s127
      %s131 = sphi 0, %s130
      %s147 = sphi 0, %s131
      %s153 = sphi 0, %s155
      %s156 = sphi 0, %s153
      %s157 = sphi 0, %s156
      %s173 = sphi 0, %s157
      %s179 = sphi 0, %s181
      %s182 = sphi 0, %s179
      %s183 = sphi 0, %s182
      %s199 = sphi 0, %s183
      %s205 = sphi 0, %s207
      %s208 = sphi 0, %s205
      %s209 = sphi 0, %s208
      %s225 = sphi 0, %s209
      %s231 = sphi 0, %s233
      %s234 = sphi 0, %s231
      %s235 = sphi 0, %s234
      %s251 = sphi 0, %s235
      %s257 = sphi 0, %s259
      %s260 = sphi 0, %s257
      %s261 = sphi 0, %s260
      %s277 = sphi 0, %s261
      %s283 = sphi 0, %s285
      %s286 = sphi 0, %s283
      %s287 = sphi 0, %s286
      %s303 = sphi 0, %s287
    $region4: #{tpu_custom_call.1} parent=1 // loop_header_branch
      %30 = sbr.rel (%p28) target = $region8
    $region5: #{tpu_custom_call.1} parent=1 // loop_body
      %s32 = ssub.s32 %s27, 1
      %s33 = ssub.s32 %s27, 2
      %s40 = sadd.s32 1, %s35
      %p41 = scmp.ge.s32.totalorder %s40, 2
      %s42 = scalar_select %p41, 0, %s40
      %s43 = sadd.s32 1, %s34
      %s44 = scalar_select %p41, %s43, %s34
      %p45 = scmp.ge.s32.totalorder %s44, 2
      %s46 = scalar_select %p45, 0, %s44
      %s47 = ssub.s32 %s34, %s46
      %p48 = scmp.eq.s32.totalorder %s47, 0
      %s50 = sadd.s32 %s49, 1
      %s51 = scalar_select %p48, %s49, %s50
      %p54 = pneg %p48
      %p55 = scmp.eq.s32.totalorder %s27, 3
      %p56 = por %p54, %p55
      %p57 = scmp.ne.s32.totalorder %s49, %s52
      %p58 = scmp.eq.s32.totalorder %s27, 0
      %p59 = por %p57, %p58
      %p60 = scmp.ne.s32.totalorder %s49, %s52
      %p61 = scmp.eq.s32.totalorder %s32, 3
      %p62 = por %p60, %p61
      %p63 = scmp.ne.s32.totalorder %s52, %s53
      %p64 = scmp.eq.s32.totalorder %s32, 0
      %p65 = por %p63, %p64
      %p66 = scmp.ne.s32.totalorder %s52, %s53
      %p67 = scmp.eq.s32.totalorder %s33, 3
      %p68 = por %p66, %p67
      %p70 = scmp.ne.s32.totalorder %s53, %s69
      %p71 = scmp.eq.s32.totalorder %s33, 0
      %p72 = por %p70, %p71
      %s73 = ssub.s32 %s35, %s42
      %p74 = scmp.eq.s32.totalorder %s73, 0
      %s76 = sadd.s32 %s75, 1
      %s77 = scalar_select %p74, %s75, %s76
      %p80 = pneg %p74
      %p81 = scmp.eq.s32.totalorder %s27, 3
      %p82 = por %p80, %p81
      %p83 = scmp.ne.s32.totalorder %s75, %s78
      %p84 = scmp.eq.s32.totalorder %s27, 0
      %p85 = por %p83, %p84
      %p86 = scmp.ne.s32.totalorder %s75, %s78
      %p87 = scmp.eq.s32.totalorder %s32, 3
      %p88 = por %p86, %p87
      %p89 = scmp.ne.s32.totalorder %s78, %s79
      %p90 = scmp.eq.s32.totalorder %s32, 0
      %p91 = por %p89, %p90
      %p92 = scmp.ne.s32.totalorder %s78, %s79
      %p93 = scmp.eq.s32.totalorder %s33, 3
      %p94 = por %p92, %p93
      %p96 = scmp.ne.s32.totalorder %s79, %s95
      %p97 = scmp.eq.s32.totalorder %s33, 0
      %p98 = por %p96, %p97
      %s99 = ssub.s32 %s35, %s42
      %p100 = scmp.eq.s32.totalorder %s99, 0
      %s102 = sadd.s32 %s101, 1
      %s103 = scalar_select %p100, %s101, %s102
      %p106 = pneg %p100
      %p107 = scmp.eq.s32.totalorder %s27, 3
      %p108 = por %p106, %p107
      %p109 = scmp.ne.s32.totalorder %s101, %s104
      %p110 = scmp.eq.s32.totalorder %s27, 0
      %p111 = por %p109, %p110
      %p112 = scmp.ne.s32.totalorder %s101, %s104
      %p113 = scmp.eq.s32.totalorder %s32, 3
      %p114 = por %p112, %p113
      %p115 = scmp.ne.s32.totalorder %s104, %s105
      %p116 = scmp.eq.s32.totalorder %s32, 0
      %p117 = por %p115, %p116
      %p118 = scmp.ne.s32.totalorder %s104, %s105
      %p119 = scmp.eq.s32.totalorder %s33, 3
      %p120 = por %p118, %p119
      %p122 = scmp.ne.s32.totalorder %s105, %s121
      %p123 = scmp.eq.s32.totalorder %s33, 0
      %p124 = por %p122, %p123
      %s125 = ssub.s32 %s35, %s42
      %p126 = scmp.eq.s32.totalorder %s125, 0
      %s128 = sadd.s32 %s127, 1
      %s129 = scalar_select %p126, %s127, %s128
      %p132 = pneg %p126
      %p133 = scmp.eq.s32.totalorder %s27, 3
      %p134 = por %p132, %p133
      %p135 = scmp.ne.s32.totalorder %s127, %s130
      %p136 = scmp.eq.s32.totalorder %s27, 0
      %p137 = por %p135, %p136
      %p138 = scmp.ne.s32.totalorder %s127, %s130
      %p139 = scmp.eq.s32.totalorder %s32, 3
      %p140 = por %p138, %p139
      %p141 = scmp.ne.s32.totalorder %s130, %s131
      %p142 = scmp.eq.s32.totalorder %s32, 0
      %p143 = por %p141, %p142
      %p144 = scmp.ne.s32.totalorder %s130, %s131
      %p145 = scmp.eq.s32.totalorder %s33, 3
      %p146 = por %p144, %p145
      %p148 = scmp.ne.s32.totalorder %s131, %s147
      %p149 = scmp.eq.s32.totalorder %s33, 0
      %p150 = por %p148, %p149
      %s151 = ssub.s32 %s35, %s42
      %p152 = scmp.eq.s32.totalorder %s151, 0
      %s154 = sadd.s32 %s153, 1
      %s155 = scalar_select %p152, %s153, %s154
      %p158 = pneg %p152
      %p159 = scmp.eq.s32.totalorder %s27, 3
      %p160 = por %p158, %p159
      %p161 = scmp.ne.s32.totalorder %s153, %s156
      %p162 = scmp.eq.s32.totalorder %s27, 0
      %p163 = por %p161, %p162
      %p164 = scmp.ne.s32.totalorder %s153, %s156
      %p165 = scmp.eq.s32.totalorder %s32, 3
      %p166 = por %p164, %p165
      %p167 = scmp.ne.s32.totalorder %s156, %s157
      %p168 = scmp.eq.s32.totalorder %s32, 0
      %p169 = por %p167, %p168
      %p170 = scmp.ne.s32.totalorder %s156, %s157
      %p171 = scmp.eq.s32.totalorder %s33, 3
      %p172 = por %p170, %p171
      %p174 = scmp.ne.s32.totalorder %s157, %s173
      %p175 = scmp.eq.s32.totalorder %s33, 0
      %p176 = por %p174, %p175
      %s177 = ssub.s32 %s35, %s42
      %p178 = scmp.eq.s32.totalorder %s177, 0
      %s180 = sadd.s32 %s179, 1
      %s181 = scalar_select %p178, %s179, %s180
      %p184 = pneg %p178
      %p185 = scmp.eq.s32.totalorder %s27, 3
      %p186 = por %p184, %p185
      %p187 = scmp.ne.s32.totalorder %s179, %s182
      %p188 = scmp.eq.s32.totalorder %s27, 0
      %p189 = por %p187, %p188
      %p190 = scmp.ne.s32.totalorder %s179, %s182
      %p191 = scmp.eq.s32.totalorder %s32, 3
      %p192 = por %p190, %p191
      %p193 = scmp.ne.s32.totalorder %s182, %s183
      %p194 = scmp.eq.s32.totalorder %s32, 0
      %p195 = por %p193, %p194
      %p196 = scmp.ne.s32.totalorder %s182, %s183
      %p197 = scmp.eq.s32.totalorder %s33, 3
      %p198 = por %p196, %p197
      %p200 = scmp.ne.s32.totalorder %s183, %s199
      %p201 = scmp.eq.s32.totalorder %s33, 0
      %p202 = por %p200, %p201
      %s203 = ssub.s32 %s35, %s42
      %p204 = scmp.eq.s32.totalorder %s203, 0
      %s206 = sadd.s32 %s205, 1
      %s207 = scalar_select %p204, %s205, %s206
      %p210 = pneg %p204
      %p211 = scmp.eq.s32.totalorder %s27, 3
      %p212 = por %p210, %p211
      %p213 = scmp.ne.s32.totalorder %s205, %s208
      %p214 = scmp.eq.s32.totalorder %s27, 0
      %p215 = por %p213, %p214
      %p216 = scmp.ne.s32.totalorder %s205, %s208
      %p217 = scmp.eq.s32.totalorder %s32, 3
      %p218 = por %p216, %p217
      %p219 = scmp.ne.s32.totalorder %s208, %s209
      %p220 = scmp.eq.s32.totalorder %s32, 0
      %p221 = por %p219, %p220
      %p222 = scmp.ne.s32.totalorder %s208, %s209
      %p223 = scmp.eq.s32.totalorder %s33, 3
      %p224 = por %p222, %p223
      %p226 = scmp.ne.s32.totalorder %s209, %s225
      %p227 = scmp.eq.s32.totalorder %s33, 0
      %p228 = por %p226, %p227
      %s229 = ssub.s32 %s35, %s42
      %p230 = scmp.eq.s32.totalorder %s229, 0
      %s232 = sadd.s32 %s231, 1
      %s233 = scalar_select %p230, %s231, %s232
      %p236 = pneg %p230
      %p237 = scmp.eq.s32.totalorder %s27, 3
      %p238 = por %p236, %p237
      %p239 = scmp.ne.s32.totalorder %s231, %s234
      %p240 = scmp.eq.s32.totalorder %s27, 0
      %p241 = por %p239, %p240
      %p242 = scmp.ne.s32.totalorder %s231, %s234
      %p243 = scmp.eq.s32.totalorder %s32, 3
      %p244 = por %p242, %p243
      %p245 = scmp.ne.s32.totalorder %s234, %s235
      %p246 = scmp.eq.s32.totalorder %s32, 0
      %p247 = por %p245, %p246
      %p248 = scmp.ne.s32.totalorder %s234, %s235
      %p249 = scmp.eq.s32.totalorder %s33, 3
      %p250 = por %p248, %p249
      %p252 = scmp.ne.s32.totalorder %s235, %s251
      %p253 = scmp.eq.s32.totalorder %s33, 0
      %p254 = por %p252, %p253
      %s255 = ssub.s32 %s35, %s42
      %p256 = scmp.eq.s32.totalorder %s255, 0
      %s258 = sadd.s32 %s257, 1
      %s259 = scalar_select %p256, %s257, %s258
      %p262 = pneg %p256
      %p263 = scmp.eq.s32.totalorder %s27, 3
      %p264 = por %p262, %p263
      %p265 = scmp.ne.s32.totalorder %s257, %s260
      %p266 = scmp.eq.s32.totalorder %s27, 0
      %p267 = por %p265, %p266
      %p268 = scmp.ne.s32.totalorder %s257, %s260
      %p269 = scmp.eq.s32.totalorder %s32, 3
      %p270 = por %p268, %p269
      %p271 = scmp.ne.s32.totalorder %s260, %s261
      %p272 = scmp.eq.s32.totalorder %s32, 0
      %p273 = por %p271, %p272
      %p274 = scmp.ne.s32.totalorder %s260, %s261
      %p275 = scmp.eq.s32.totalorder %s33, 3
      %p276 = por %p274, %p275
      %p278 = scmp.ne.s32.totalorder %s261, %s277
      %p279 = scmp.eq.s32.totalorder %s33, 0
      %p280 = por %p278, %p279
      %s281 = ssub.s32 %s34, %s46
      %p282 = scmp.eq.s32.totalorder %s281, 0
      %s284 = sadd.s32 %s283, 1
      %s285 = scalar_select %p282, %s283, %s284
      %p288 = pneg %p282
      %p289 = scmp.eq.s32.totalorder %s27, 3
      %p290 = por %p288, %p289
      %p291 = scmp.ne.s32.totalorder %s283, %s286
      %p292 = scmp.eq.s32.totalorder %s27, 0
      %p293 = por %p291, %p292
      %p294 = scmp.ne.s32.totalorder %s283, %s286
      %p295 = scmp.eq.s32.totalorder %s32, 3
      %p296 = por %p294, %p295
      %p297 = scmp.ne.s32.totalorder %s286, %s287
      %p298 = scmp.eq.s32.totalorder %s32, 0
      %p299 = por %p297, %p298
      %p300 = scmp.ne.s32.totalorder %s286, %s287
      %p301 = scmp.eq.s32.totalorder %s33, 3
      %p302 = por %p300, %p301
      %p304 = scmp.ne.s32.totalorder %s287, %s303
      %p305 = scmp.eq.s32.totalorder %s33, 0
      %p306 = por %p304, %p305
      %p307 = scmp.le.s32.totalorder 1, %s27
      %p308 = scmp.lt.s32.totalorder %s27, 5
      %p309 = pnand %p307, %p308
      %p310 = pneg %p309
      // Predicated region
      $region9: #{tpu_custom_call.1} parent=5 // pred_check
        _
      $region10: #{tpu_custom_call.1} parent=5 // pred_check_branch
        %312 = sbr.rel (%p309) target = $region12
      $region11: #{tpu_custom_call.1} parent=5 // pred_region
        %s313 = ssub.s32 %s27, 1
      $region12: #{tpu_custom_call.1} parent=5 // pred_fallthru
        _
      %p314 = scmp.lt.s32.totalorder %s27, 4
      // Predicated region
      $region13: #{tpu_custom_call.1} parent=5 // pred_check
        %p315 = pneg %p314
      $region14: #{tpu_custom_call.1} parent=5 // pred_check_branch
        %317 = sbr.rel (%p315) target = $region16
      $region15: #{tpu_custom_call.1} parent=5 // pred_region
        // Predicated region
        $region17: #{tpu_custom_call.1} parent=15 // pred_check
          %p318 = pneg %p59
        $region18: #{tpu_custom_call.1} parent=15 // pred_check_branch
          %320 = sbr.rel (%p318) target = $region20
        $region19: #{tpu_custom_call.1} parent=15 // pred_region
          %s321 = sand.u32 %s49, 1
          %s322 = scalar_lea.sflag [#allocation6], %s321
          %s323 = sand.u32 %s49, 1
          %s324 = smul.addr %s323, 8
          %s325 = scalar_lea.vmem [#allocation5], %s324
          %s327 = ssub.s32 128, 128
          %328 = vsyncadd %s322, %s327
          %s329 = smul.addr %s34, 128
          %s330 = scalar_lea.hbm %s0, %s329
          %s332 = sshll.u32 %s325, 4
          %s333 = int_to_ptr.vmem [resolvable:$true] %s332
          %335 = dma.hbm_to_vmem [thread:$0]  %s330, 128, %s333, %s322
        $region20: #{tpu_custom_call.1} parent=15 // pred_fallthru
          _
        // Predicated region
        $region21: #{tpu_custom_call.1} parent=15 // pred_check
          %p336 = pneg %p85
        $region22: #{tpu_custom_call.1} parent=15 // pred_check_branch
          %338 = sbr.rel (%p336) target = $region24
        $region23: #{tpu_custom_call.1} parent=15 // pred_region
          %p339 = scmp.lt.s32.totalorder %s35, 1
          %s340 = scalar_select %p339, %s35, 1
          %s341 = scalar_lea.vmem %s1, %s340
        $region24: #{tpu_custom_call.1} parent=15 // pred_fallthru
          _
        // Predicated region
        $region25: #{tpu_custom_call.1} parent=15 // pred_check
          %p342 = pneg %p111
        $region26: #{tpu_custom_call.1} parent=15 // pred_check_branch
          %344 = sbr.rel (%p342) target = $region28
        $region27: #{tpu_custom_call.1} parent=15 // pred_region
          %p345 = scmp.lt.s32.totalorder %s35, 1
          %s346 = scalar_select %p345, %s35, 1
          %s347 = scalar_lea.vmem %s2, %s346
        $region28: #{tpu_custom_call.1} parent=15 // pred_fallthru
          _
        // Predicated region
        $region29: #{tpu_custom_call.1} parent=15 // pred_check
          %p348 = pneg %p137
        $region30: #{tpu_custom_call.1} parent=15 // pred_check_branch
          %350 = sbr.rel (%p348) target = $region32
        $region31: #{tpu_custom_call.1} parent=15 // pred_region
          %s351 = sand.u32 %s27, 1
          %s352 = scalar_lea.sflag [#allocation9], %s351
          %s353 = sand.u32 %s127, 1
          %s354 = smul.addr %s353, 32
          %s355 = scalar_lea.vmem [#allocation8], %s354
          %s357 = ssub.s32 512, 512
          %358 = vsyncadd %s352, %s357
          %s359 = smul.addr %s35, 4
          %s360 = smul.addr %s359, 128
          %s361 = scalar_lea.hbm %s3, %s360
          %s362 = sshll.u32 %s355, 4
          %s363 = int_to_ptr.vmem [resolvable:$true] %s362
          %368 = dma.hbm_to_vmem [thread:$0]  %s361, 512, %s363, %s352, 128, 128, 8
        $region32: #{tpu_custom_call.1} parent=15 // pred_fallthru
          _
        // Predicated region
        $region33: #{tpu_custom_call.1} parent=15 // pred_check
          %p369 = pneg %p163
        $region34: #{tpu_custom_call.1} parent=15 // pred_check_branch
          %371 = sbr.rel (%p369) target = $region36
        $region35: #{tpu_custom_call.1} parent=15 // pred_region
          %s372 = sand.u32 %s27, 1
          %s373 = scalar_lea.sflag [#allocation9], %s372
          %s374 = sand.u32 %s153, 1
          %s375 = smul.addr %s374, 32
          %s376 = scalar_lea.vmem [#allocation10], %s375
          %s378 = ssub.s32 512, 512
          %379 = vsyncadd %s373, %s378
          %s380 = smul.addr %s35, 4
          %s381 = smul.addr %s380, 128
          %s382 = scalar_lea.hbm %s4, %s381
          %s383 = sshll.u32 %s376, 4
          %s384 = int_to_ptr.vmem [resolvable:$true] %s383
          %389 = dma.hbm_to_vmem [thread:$0]  %s382, 512, %s384, %s373, 128, 128, 8
        $region36: #{tpu_custom_call.1} parent=15 // pred_fallthru
          _
        // Predicated region
        $region37: #{tpu_custom_call.1} parent=15 // pred_check
          %p390 = pneg %p189
        $region38: #{tpu_custom_call.1} parent=15 // pred_check_branch
          %392 = sbr.rel (%p390) target = $region40
        $region39: #{tpu_custom_call.1} parent=15 // pred_region
          %p393 = scmp.lt.s32.totalorder %s35, 1
          %s394 = scalar_select %p393, %s35, 1
          %s395 = scalar_lea.vmem %s5, %s394
        $region40: #{tpu_custom_call.1} parent=15 // pred_fallthru
          _
        // Predicated region
        $region41: #{tpu_custom_call.1} parent=15 // pred_check
          %p396 = pneg %p215
        $region42: #{tpu_custom_call.1} parent=15 // pred_check_branch
          %398 = sbr.rel (%p396) target = $region44
        $region43: #{tpu_custom_call.1} parent=15 // pred_region
          %p399 = scmp.lt.s32.totalorder %s35, 1
          %s400 = scalar_select %p399, %s35, 1
          %s401 = scalar_lea.vmem %s6, %s400
        $region44: #{tpu_custom_call.1} parent=15 // pred_fallthru
          _
        // Predicated region
        $region45: #{tpu_custom_call.1} parent=15 // pred_check
          %p402 = pneg %p241
        $region46: #{tpu_custom_call.1} parent=15 // pred_check_branch
          %404 = sbr.rel (%p402) target = $region48
        $region47: #{tpu_custom_call.1} parent=15 // pred_region
          %p405 = scmp.lt.s32.totalorder %s35, 1
          %s406 = scalar_select %p405, %s35, 1
          %s407 = scalar_lea.vmem %s7, %s406
        $region48: #{tpu_custom_call.1} parent=15 // pred_fallthru
          _
        // Predicated region
        $region49: #{tpu_custom_call.1} parent=15 // pred_check
          %p408 = pneg %p267
        $region50: #{tpu_custom_call.1} parent=15 // pred_check_branch
          %410 = sbr.rel (%p408) target = $region52
        $region51: #{tpu_custom_call.1} parent=15 // pred_region
          %s411 = sand.u32 %s257, 1
          %s412 = scalar_lea.sflag [#allocation12], %s411
          %s413 = sand.u32 %s257, 1
          %s414 = smul.addr %s413, 32
          %s415 = scalar_lea.vmem [#allocation11], %s414
          %s417 = ssub.s32 512, 512
          %418 = vsyncadd %s412, %s417
          %s419 = smul.addr %s35, 4
          %s420 = smul.addr %s419, 128
          %s421 = scalar_lea.hbm %s8, %s420
          %s422 = sshll.u32 %s415, 4
          %s423 = int_to_ptr.vmem [resolvable:$true] %s422
          %428 = dma.hbm_to_vmem [thread:$0]  %s421, 512, %s423, %s412, 128, 128, 8
        $region52: #{tpu_custom_call.1} parent=15 // pred_fallthru
          _
      $region16: #{tpu_custom_call.1} parent=5 // pred_fallthru
        _
      %p429 = scmp.le.s32.totalorder 1, %s27
      %p430 = scmp.lt.s32.totalorder %s27, 5
      %p431 = pnand %p429, %p430
      %p432 = pneg %p431
      // Predicated region
      $region53: #{tpu_custom_call.1} parent=5 // pred_check
        _
      $region54: #{tpu_custom_call.1} parent=5 // pred_check_branch
        %434 = sbr.rel (%p431) target = $region56
      $region55: #{tpu_custom_call.1} parent=5 // pred_region
        %s435 = ssub.s32 %s27, 1
        %s436 = sand.u32 %s52, 1
        %s437 = scalar_lea.sflag [#allocation6], %s436
        %s438 = sand.u32 %s52, 1
        %s439 = smul.addr %s438, 8
        %s440 = scalar_lea.vmem [#allocation5], %s439
        // Predicated region
        $region57: #{tpu_custom_call.1} parent=55 // pred_check
          %p441 = pneg %p65
        $region58: #{tpu_custom_call.1} parent=55 // pred_check_branch
          %443 = sbr.rel (%p441) target = $region60
        $region59: #{tpu_custom_call.1} parent=55 // pred_region
          %444 = dma.done %s437, 128
        $region60: #{tpu_custom_call.1} parent=55 // pred_fallthru
          _
        %s445 = sand.u32 %s32, 1
        %s446 = scalar_lea.sflag [#allocation9], %s445
        %s447 = sand.u32 %s130, 1
        %s448 = smul.addr %s447, 32
        %s449 = scalar_lea.vmem [#allocation8], %s448
        // Predicated region
        $region61: #{tpu_custom_call.1} parent=55 // pred_check
          %p450 = pneg %p143
        $region62: #{tpu_custom_call.1} parent=55 // pred_check_branch
          %452 = sbr.rel (%p450) target = $region64
        $region63: #{tpu_custom_call.1} parent=55 // pred_region
          %453 = dma.done %s446, 512
        $region64: #{tpu_custom_call.1} parent=55 // pred_fallthru
          _
        %s454 = sand.u32 %s32, 1
        %s455 = scalar_lea.sflag [#allocation9], %s454
        %s456 = sand.u32 %s156, 1
        %s457 = smul.addr %s456, 32
        %s458 = scalar_lea.vmem [#allocation10], %s457
        // Predicated region
        $region65: #{tpu_custom_call.1} parent=55 // pred_check
          %p459 = pneg %p169
        $region66: #{tpu_custom_call.1} parent=55 // pred_check_branch
          %461 = sbr.rel (%p459) target = $region68
        $region67: #{tpu_custom_call.1} parent=55 // pred_region
          %462 = dma.done %s455, 512
        $region68: #{tpu_custom_call.1} parent=55 // pred_fallthru
          _
        %s463 = sand.u32 %s260, 1
        %s464 = scalar_lea.sflag [#allocation12], %s463
        %s465 = sand.u32 %s260, 1
        %s466 = smul.addr %s465, 32
        %s467 = scalar_lea.vmem [#allocation11], %s466
        // Predicated region
        $region69: #{tpu_custom_call.1} parent=55 // pred_check
          %p468 = pneg %p273
        $region70: #{tpu_custom_call.1} parent=55 // pred_check_branch
          %470 = sbr.rel (%p468) target = $region72
        $region71: #{tpu_custom_call.1} parent=55 // pred_region
          %471 = dma.done %s464, 512
        $region72: #{tpu_custom_call.1} parent=55 // pred_fallthru
          _
        %s472 = sand.u32 %s52, 1
        %s473 = scalar_lea.sflag [#allocation6], %s472
        %s474 = sand.u32 %s52, 1
        %s475 = smul.addr %s474, 8
        %s476 = scalar_lea.vmem [#allocation5], %s475
        %p477 = pneg %p65
        %p478 = pneg %p62
        %p479 = scmp.lt.s32.totalorder %s37, 1
        %s480 = scalar_select %p479, %s37, 1
        %s481 = scalar_lea.vmem %s1, %s480
        %p482 = pneg %p91
        %p483 = pneg %p88
        %p484 = scmp.lt.s32.totalorder %s37, 1
        %s485 = scalar_select %p484, %s37, 1
        %s486 = scalar_lea.vmem %s2, %s485
        %p487 = pneg %p117
        %p488 = pneg %p114
        %s489 = sand.u32 %s32, 1
        %s490 = scalar_lea.sflag [#allocation9], %s489
        %s491 = sand.u32 %s130, 1
        %s492 = smul.addr %s491, 32
        %s493 = scalar_lea.vmem [#allocation8], %s492
        %p494 = pneg %p143
        %p495 = pneg %p140
        %s496 = sand.u32 %s32, 1
        %s497 = scalar_lea.sflag [#allocation9], %s496
        %s498 = sand.u32 %s156, 1
        %s499 = smul.addr %s498, 32
        %s500 = scalar_lea.vmem [#allocation10], %s499
        %p501 = pneg %p169
        %p502 = pneg %p166
        %p503 = scmp.lt.s32.totalorder %s37, 1
        %s504 = scalar_select %p503, %s37, 1
        %s505 = scalar_lea.vmem %s5, %s504
        %p506 = pneg %p195
        %p507 = pneg %p192
        %p508 = scmp.lt.s32.totalorder %s37, 1
        %s509 = scalar_select %p508, %s37, 1
        %s510 = scalar_lea.vmem %s6, %s509
        %p511 = pneg %p221
        %p512 = pneg %p218
        %p513 = scmp.lt.s32.totalorder %s37, 1
        %s514 = scalar_select %p513, %s37, 1
        %s515 = scalar_lea.vmem %s7, %s514
        %p516 = pneg %p247
        %p517 = pneg %p244
        %s518 = sand.u32 %s260, 1
        %s519 = scalar_lea.sflag [#allocation12], %s518
        %s520 = sand.u32 %s260, 1
        %s521 = smul.addr %s520, 32
        %s522 = scalar_lea.vmem [#allocation11], %s521
        %p523 = pneg %p273
        %p524 = pneg %p270
        %p525 = pneg %p299
        %p526 = pneg %p296
        %s527 = sand.u32 %s286, 1
        %s528 = scalar_lea.sflag [#allocation7], %s527
        %s529 = sand.u32 %s286, 1
        %s530 = smul.addr %s529, 8
        %s531 = scalar_lea.vmem [#allocation13], %s530
        %p532 = scmp.lt.s32.totalorder %s37, 1
        %s533 = scalar_select %p532, %s37, 1
        %s534 = scalar_lea.vmem %s1, %s533
        %p535 = scmp.lt.s32.totalorder %s37, 1
        %s536 = scalar_select %p535, %s37, 1
        %s537 = scalar_lea.vmem %s2, %s536
        %p538 = scmp.lt.s32.totalorder %s37, 1
        %s539 = scalar_select %p538, %s37, 1
        %s540 = scalar_lea.vmem %s5, %s539
        %p541 = scmp.lt.s32.totalorder %s37, 1
        %s542 = scalar_select %p541, %s37, 1
        %s543 = scalar_lea.vmem %s6, %s542
        %p544 = scmp.lt.s32.totalorder %s37, 1
        %s545 = scalar_select %p544, %s37, 1
        %s546 = scalar_lea.vmem %s7, %s545
        %p547 = scmp.eq.s32.totalorder %s37, 0
        // Predicated region
        $region73: #{tpu_custom_call.1} parent=55 // pred_check
          %p548 = pneg %p547
        $region74: #{tpu_custom_call.1} parent=55 // pred_check_branch
          %550 = sbr.rel (%p548) target = $region76
        $region75: #{tpu_custom_call.1} parent=55 // pred_region
          %v551 = vld [vmem:[%s440] sm:$0xff]
          %vm552 = vcmask 261120
          %553 = vst.msk [vmem:[#allocation2] sm:$0xff] %vm552, %v551
        $region76: #{tpu_custom_call.1} parent=55 // pred_fallthru
          _
        %v554 = vld [vmem:[#allocation2] sm:$0xff]
        %v555 = vld [vmem:[%s534] sm:$0x1]
        %v556 = vld [vmem:[%s537] sm:$0x1]
        %vm557 = vcmask 261120
        %v558 = vsel %vm557, %v554, 0.0
        %559 = vadd.xlane.f32.xlu0 %v558
        %v560 = vpop.xlane.xlu0 %559
        %v561 = vrcp.pop 32.0
        %v562 = vmul.f32 %v560, %v561
        %v563 = vsub.f32 %v554, %v562
        %v564 = vmul.f32 %v563, %v563
        %v565 = vsel %vm557, %v564, 0.0
        %566 = vadd.xlane.f32.xlu0 %v565
        %v567 = vpop.xlane.xlu0 %566
        %v568 = vmul.f32 %v567, %v561
        %v569 = vadd.f32 %v568, 1e-05
        %v570 = vrsqrt.pop %v569
        %v571 = vmul.f32 %v563, %v570
        %v573 = vlaneseq
        %v574 = vshrl.u32 %v573, 7
        %v575 = vsub.s32 0, %v574
        %v576 = vrot.slane %v555, %v575
        %v578 = vmul.f32 %v571, %v576
        %v580 = vlaneseq
        %v581 = vshrl.u32 %v580, 7
        %v582 = vsub.s32 0, %v581
        %v583 = vrot.slane %v556, %v582
        %v585 = vadd.f32 %v578, %v583
        %v586 = vld [vmem:[%s449] sm:$0xff]
        %v587 = vld [vmem:[%s449 + $0x8] sm:$0xff]
        %v588 = vld [vmem:[%s449 + $0x10] sm:$0xff]
        %v589 = vld [vmem:[%s449 + $0x18] sm:$0xff]
        %v591 = vsel %vm557, %v585, 0
        %593 = vmatprep.subr.mxu0 0.0
        %594 = vmatpush1.msra.mxu0 %v586
        %595 = vmatprep.subr.mxu0 0.0
        %596 = vmatpush1.msra.mxu0 %v587
        %597 = vmatprep.subr.mxu0 0.0
        %598 = vmatpush1.msra.mxu0 %v588
        %599 = vmatprep.subr.mxu0 0.0
        %600 = vmatpush1.msra.mxu0 %v589
        %601 = vmatprep.subr.mxu0 0.0
        %602 = vmatpush1.msra.mxu0 0.0
        %603 = vmatprep.subr.mxu0 0.0
        %604 = vmatpush1.msra.mxu0 0.0
        %605 = vmatprep.subr.mxu0 0.0
        %606 = vmatpush1.msra.mxu0 0.0
        %607 = vmatprep.subr.mxu0 0.0
        %608 = vmatpush1.msra.mxu0 0.0
        %609 = vmatprep.subr.mxu0 0.0
        %610 = vmatpush1.msra.mxu0 0.0
        %611 = vmatprep.subr.mxu0 0.0
        %612 = vmatpush1.msra.mxu0 0.0
        %613 = vmatprep.subr.mxu0 0.0
        %614 = vmatpush1.msra.mxu0 0.0
        %615 = vmatprep.subr.mxu0 0.0
        %616 = vmatpush1.msra.mxu0 0.0
        %617 = vmatprep.subr.mxu0 0.0
        %618 = vmatpush1.msra.mxu0 0.0
        %619 = vmatprep.subr.mxu0 0.0
        %620 = vmatpush1.msra.mxu0 0.0
        %621 = vmatprep.subr.mxu0 0.0
        %622 = vmatpush1.msra.mxu0 0.0
        %623 = vmatprep.subr.mxu0 0.0
        %624 = vmatpush1.msra.mxu0 0.0
        %625 = vmatprep.subr.mxu0 0.0
        %626 = vmatpush1.msra.mxu0 0.0
        %627 = vmatprep.subr.mxu0 0.0
        %628 = vmatpush1.msra.mxu0 0.0
        %629 = vmatprep.subr.mxu0 0.0
        %630 = vmatpush1.msra.mxu0 0.0
        %631 = vmatprep.subr.mxu0 0.0
        %632 = vmatpush1.msra.mxu0 0.0
        %633 = vmatprep.subr.mxu0 0.0
        %634 = vmatpush1.msra.mxu0 0.0
        %635 = vmatprep.subr.mxu0 0.0
        %636 = vmatpush1.msra.mxu0 0.0
        %637 = vmatprep.subr.mxu0 0.0
        %638 = vmatpush1.msra.mxu0 0.0
        %639 = vmatprep.subr.mxu0 0.0
        %640 = vmatpush1.msra.mxu0 0.0
        %641 = vmatprep.subr.mxu0 0.0
        %642 = vmatpush1.msra.mxu0 0.0
        %643 = vmatprep.subr.mxu0 0.0
        %644 = vmatpush1.msra.mxu0 0.0
        %645 = vmatprep.subr.mxu0 0.0
        %646 = vmatpush1.msra.mxu0 0.0
        %647 = vmatprep.subr.mxu0 0.0
        %648 = vmatpush1.msra.mxu0 0.0
        %649 = vmatprep.subr.mxu0 0.0
        %650 = vmatpush1.msra.mxu0 0.0
        %651 = vmatprep.subr.mxu0 0.0
        %652 = vmatpush1.msra.mxu0 0.0
        %653 = vmatprep.subr.mxu0 0.0
        %654 = vmatpush1.msra.mxu0 0.0
        %655 = vmatprep.subr.mxu0 0.0
        %656 = vmatpush1.msra.mxu0 0.0
        %657 = vmatprep.mubr.f32.mxu0 0.0
        %658 = vmatmul.mubr.f32.gmra.mrb[0].mxu0 %v591
        %v659 = vpop.f32.mrb[0].mxu0
        %v660 = vadd.f32 0.0, %v659
        %v661 = vpop.f32.mrb[0].mxu0
        %662 = vdwg.mxu0
        %663 = vst.msk [vmem:[#allocation3] sm:$0xff] %vm557, %v660
        %v664 = vld [vmem:[#allocation3] sm:$0xff]
        %v665 = vmul.f32 %v664, 0.35355338
        %vm666 = vcmask 64512
        %v668 = vsel %vm666, %v665, 0
        %v671 = vsel %vm666, %v664, 0
        %673 = vmatprep.subr.mxu0 0.0
        %674 = vmatpush1.xpose.msra.mxu0 %v671
        %675 = vmatprep.subr.mxu0 0.0
        %676 = vmatpush1.xpose.msra.mxu0 0.0
        %677 = vmatprep.subr.mxu0 0.0
        %678 = vmatpush1.xpose.msra.mxu0 0.0
        %679 = vmatprep.subr.mxu0 0.0
        %680 = vmatpush1.xpose.msra.mxu0 0.0
        %681 = vmatprep.subr.mxu0 0.0
        %682 = vmatpush1.xpose.msra.mxu0 0.0
        %683 = vmatprep.subr.mxu0 0.0
        %684 = vmatpush1.xpose.msra.mxu0 0.0
        %685 = vmatprep.subr.mxu0 0.0
        %686 = vmatpush1.xpose.msra.mxu0 0.0
        %687 = vmatprep.subr.mxu0 0.0
        %688 = vmatpush1.xpose.msra.mxu0 0.0
        %689 = vmatprep.subr.mxu0 0.0
        %690 = vmatpush1.xpose.msra.mxu0 0.0
        %691 = vmatprep.subr.mxu0 0.0
        %692 = vmatpush1.xpose.msra.mxu0 0.0
        %693 = vmatprep.subr.mxu0 0.0
        %694 = vmatpush1.xpose.msra.mxu0 0.0
        %695 = vmatprep.subr.mxu0 0.0
        %696 = vmatpush1.xpose.msra.mxu0 0.0
        %697 = vmatprep.subr.mxu0 0.0
        %698 = vmatpush1.xpose.msra.mxu0 0.0
        %699 = vmatprep.subr.mxu0 0.0
        %700 = vmatpush1.xpose.msra.mxu0 0.0
        %701 = vmatprep.subr.mxu0 0.0
        %702 = vmatpush1.xpose.msra.mxu0 0.0
        %703 = vmatprep.subr.mxu0 0.0
        %704 = vmatpush1.xpose.msra.mxu0 0.0
        %705 = vmatprep.subr.mxu0 0.0
        %706 = vmatpush1.xpose.msra.mxu0 0.0
        %707 = vmatprep.subr.mxu0 0.0
        %708 = vmatpush1.xpose.msra.mxu0 0.0
        %709 = vmatprep.subr.mxu0 0.0
        %710 = vmatpush1.xpose.msra.mxu0 0.0
        %711 = vmatprep.subr.mxu0 0.0
        %712 = vmatpush1.xpose.msra.mxu0 0.0
        %713 = vmatprep.subr.mxu0 0.0
        %714 = vmatpush1.xpose.msra.mxu0 0.0
        %715 = vmatprep.subr.mxu0 0.0
        %716 = vmatpush1.xpose.msra.mxu0 0.0
        %717 = vmatprep.subr.mxu0 0.0
        %718 = vmatpush1.xpose.msra.mxu0 0.0
        %719 = vmatprep.subr.mxu0 0.0
        %720 = vmatpush1.xpose.msra.mxu0 0.0
        %721 = vmatprep.subr.mxu0 0.0
        %722 = vmatpush1.xpose.msra.mxu0 0.0
        %723 = vmatprep.subr.mxu0 0.0
        %724 = vmatpush1.xpose.msra.mxu0 0.0
        %725 = vmatprep.subr.mxu0 0.0
        %726 = vmatpush1.xpose.msra.mxu0 0.0
        %727 = vmatprep.subr.mxu0 0.0
        %728 = vmatpush1.xpose.msra.mxu0 0.0
        %729 = vmatprep.subr.mxu0 0.0
        %730 = vmatpush1.xpose.msra.mxu0 0.0
        %731 = vmatprep.subr.mxu0 0.0
        %732 = vmatpush1.xpose.msra.mxu0 0.0
        %733 = vmatprep.subr.mxu0 0.0
        %734 = vmatpush1.xpose.msra.mxu0 0.0
        %735 = vmatprep.subr.mxu0 0.0
        %736 = vmatpush1.xpose.msra.mxu0 0.0
        %737 = vmatprep.mubr.f32.mxu0 0.0
        %738 = vmatmul.mubr.f32.gmra.mrb[0].mxu0 %v668
        %v739 = vpop.f32.mrb[0].mxu0
        %v740 = vadd.f32 0.0, %v739
        %v741 = vpop.f32.mrb[0].mxu0
        %742 = vdwg.mxu0
        %v743 = vsel %vm666, %v740, -inf
        %744 = vmax.xlane.f32.xlu0 %v743
        %v745 = vpop.xlane.xlu0 %744
        %v746 = vsub.f32 %v740, %v745
        %v747 = vmul.f32 %v746, 1.442695
        %v748 = vpow.pop %v747
        %v749 = vsel %vm666, %v748, 0.0
        %750 = vadd.xlane.f32.xlu0 %v749
        %v751 = vpop.xlane.xlu0 %750
        %v753 = vsel %vm666, %v748, 0
        %755 = vmatprep.subr.mxu0 0.0
        %756 = vmatpush1.msra.mxu0 %v664
        %757 = vmatprep.subr.mxu0 0.0
        %758 = vmatpush1.msra.mxu0 0.0
        %759 = vmatprep.subr.mxu0 0.0
        %760 = vmatpush1.msra.mxu0 0.0
        %761 = vmatprep.subr.mxu0 0.0
        %762 = vmatpush1.msra.mxu0 0.0
        %763 = vmatprep.subr.mxu0 0.0
        %764 = vmatpush1.msra.mxu0 0.0
        %765 = vmatprep.subr.mxu0 0.0
        %766 = vmatpush1.msra.mxu0 0.0
        %767 = vmatprep.subr.mxu0 0.0
        %768 = vmatpush1.msra.mxu0 0.0
        %769 = vmatprep.subr.mxu0 0.0
        %770 = vmatpush1.msra.mxu0 0.0
        %771 = vmatprep.subr.mxu0 0.0
        %772 = vmatpush1.msra.mxu0 0.0
        %773 = vmatprep.subr.mxu0 0.0
        %774 = vmatpush1.msra.mxu0 0.0
        %775 = vmatprep.subr.mxu0 0.0
        %776 = vmatpush1.msra.mxu0 0.0
        %777 = vmatprep.subr.mxu0 0.0
        %778 = vmatpush1.msra.mxu0 0.0
        %779 = vmatprep.subr.mxu0 0.0
        %780 = vmatpush1.msra.mxu0 0.0
        %781 = vmatprep.subr.mxu0 0.0
        %782 = vmatpush1.msra.mxu0 0.0
        %783 = vmatprep.subr.mxu0 0.0
        %784 = vmatpush1.msra.mxu0 0.0
        %785 = vmatprep.subr.mxu0 0.0
        %786 = vmatpush1.msra.mxu0 0.0
        %787 = vmatprep.subr.mxu0 0.0
        %788 = vmatpush1.msra.mxu0 0.0
        %789 = vmatprep.subr.mxu0 0.0
        %790 = vmatpush1.msra.mxu0 0.0
        %791 = vmatprep.subr.mxu0 0.0
        %792 = vmatpush1.msra.mxu0 0.0
        %793 = vmatprep.subr.mxu0 0.0
        %794 = vmatpush1.msra.mxu0 0.0
        %795 = vmatprep.subr.mxu0 0.0
        %796 = vmatpush1.msra.mxu0 0.0
        %797 = vmatprep.subr.mxu0 0.0
        %798 = vmatpush1.msra.mxu0 0.0
        %799 = vmatprep.subr.mxu0 0.0
        %800 = vmatpush1.msra.mxu0 0.0
        %801 = vmatprep.subr.mxu0 0.0
        %802 = vmatpush1.msra.mxu0 0.0
        %803 = vmatprep.subr.mxu0 0.0
        %804 = vmatpush1.msra.mxu0 0.0
        %805 = vmatprep.subr.mxu0 0.0
        %806 = vmatpush1.msra.mxu0 0.0
        %807 = vmatprep.subr.mxu0 0.0
        %808 = vmatpush1.msra.mxu0 0.0
        %809 = vmatprep.subr.mxu0 0.0
        %810 = vmatpush1.msra.mxu0 0.0
        %811 = vmatprep.subr.mxu0 0.0
        %812 = vmatpush1.msra.mxu0 0.0
        %813 = vmatprep.subr.mxu0 0.0
        %814 = vmatpush1.msra.mxu0 0.0
        %815 = vmatprep.subr.mxu0 0.0
        %816 = vmatpush1.msra.mxu0 0.0
        %817 = vmatprep.subr.mxu0 0.0
        %818 = vmatpush1.msra.mxu0 0.0
        %819 = vmatprep.mubr.f32.mxu0 0.0
        %820 = vmatmul.mubr.f32.gmra.mrb[0].mxu0 %v753
        %v821 = vpop.f32.mrb[0].mxu0
        %v822 = vadd.f32 0.0, %v821
        %v823 = vpop.f32.mrb[0].mxu0
        %824 = vdwg.mxu0
        %v825 = vrcp.pop %v751
        %v826 = vmul.f32 %v822, %v825
        %827 = vst.msk [vmem:[#allocation4] sm:$0xff] %vm666, %v826
        %v828 = vld [vmem:[#allocation3] sm:$0xff]
        %v829 = vmul.f32 %v828, 0.35355338
        %831 = vrot.lane.b32.xlu0 %v829, 120
        %v832 = vpop.permute.xlu0 %831
        %834 = vrot.lane.b32.xlu0 %v828, 120
        %v835 = vpop.permute.xlu0 %834
        %v836 = vsel %vm666, %v832, 0
        %v838 = vsel %vm666, %v835, 0
        %840 = vmatprep.subr.mxu0 0.0
        %841 = vmatpush1.xpose.msra.mxu0 %v838
        %842 = vmatprep.subr.mxu0 0.0
        %843 = vmatpush1.xpose.msra.mxu0 0.0
        %844 = vmatprep.subr.mxu0 0.0
        %845 = vmatpush1.xpose.msra.mxu0 0.0
        %846 = vmatprep.subr.mxu0 0.0
        %847 = vmatpush1.xpose.msra.mxu0 0.0
        %848 = vmatprep.subr.mxu0 0.0
        %849 = vmatpush1.xpose.msra.mxu0 0.0
        %850 = vmatprep.subr.mxu0 0.0
        %851 = vmatpush1.xpose.msra.mxu0 0.0
        %852 = vmatprep.subr.mxu0 0.0
        %853 = vmatpush1.xpose.msra.mxu0 0.0
        %854 = vmatprep.subr.mxu0 0.0
        %855 = vmatpush1.xpose.msra.mxu0 0.0
        %856 = vmatprep.subr.mxu0 0.0
        %857 = vmatpush1.xpose.msra.mxu0 0.0
        %858 = vmatprep.subr.mxu0 0.0
        %859 = vmatpush1.xpose.msra.mxu0 0.0
        %860 = vmatprep.subr.mxu0 0.0
        %861 = vmatpush1.xpose.msra.mxu0 0.0
        %862 = vmatprep.subr.mxu0 0.0
        %863 = vmatpush1.xpose.msra.mxu0 0.0
        %864 = vmatprep.subr.mxu0 0.0
        %865 = vmatpush1.xpose.msra.mxu0 0.0
        %866 = vmatprep.subr.mxu0 0.0
        %867 = vmatpush1.xpose.msra.mxu0 0.0
        %868 = vmatprep.subr.mxu0 0.0
        %869 = vmatpush1.xpose.msra.mxu0 0.0
        %870 = vmatprep.subr.mxu0 0.0
        %871 = vmatpush1.xpose.msra.mxu0 0.0
        %872 = vmatprep.subr.mxu0 0.0
        %873 = vmatpush1.xpose.msra.mxu0 0.0
        %874 = vmatprep.subr.mxu0 0.0
        %875 = vmatpush1.xpose.msra.mxu0 0.0
        %876 = vmatprep.subr.mxu0 0.0
        %877 = vmatpush1.xpose.msra.mxu0 0.0
        %878 = vmatprep.subr.mxu0 0.0
        %879 = vmatpush1.xpose.msra.mxu0 0.0
        %880 = vmatprep.subr.mxu0 0.0
        %881 = vmatpush1.xpose.msra.mxu0 0.0
        %882 = vmatprep.subr.mxu0 0.0
        %883 = vmatpush1.xpose.msra.mxu0 0.0
        %884 = vmatprep.subr.mxu0 0.0
        %885 = vmatpush1.xpose.msra.mxu0 0.0
        %886 = vmatprep.subr.mxu0 0.0
        %887 = vmatpush1.xpose.msra.mxu0 0.0
        %888 = vmatprep.subr.mxu0 0.0
        %889 = vmatpush1.xpose.msra.mxu0 0.0
        %890 = vmatprep.subr.mxu0 0.0
        %891 = vmatpush1.xpose.msra.mxu0 0.0
        %892 = vmatprep.subr.mxu0 0.0
        %893 = vmatpush1.xpose.msra.mxu0 0.0
        %894 = vmatprep.subr.mxu0 0.0
        %895 = vmatpush1.xpose.msra.mxu0 0.0
        %896 = vmatprep.subr.mxu0 0.0
        %897 = vmatpush1.xpose.msra.mxu0 0.0
        %898 = vmatprep.subr.mxu0 0.0
        %899 = vmatpush1.xpose.msra.mxu0 0.0
        %900 = vmatprep.subr.mxu0 0.0
        %901 = vmatpush1.xpose.msra.mxu0 0.0
        %902 = vmatprep.subr.mxu0 0.0
        %903 = vmatpush1.xpose.msra.mxu0 0.0
        %904 = vmatprep.mubr.f32.mxu0 0.0
        %905 = vmatmul.mubr.f32.gmra.mrb[0].mxu0 %v836
        %v906 = vpop.f32.mrb[0].mxu0
        %v907 = vadd.f32 0.0, %v906
        %v908 = vpop.f32.mrb[0].mxu0
        %909 = vdwg.mxu0
        %v910 = vsel %vm666, %v907, -inf
        %911 = vmax.xlane.f32.xlu0 %v910
        %v912 = vpop.xlane.xlu0 %911
        %v913 = vsub.f32 %v907, %v912
        %v914 = vmul.f32 %v913, 1.442695
        %v915 = vpow.pop %v914
        %v916 = vsel %vm666, %v915, 0.0
        %917 = vadd.xlane.f32.xlu0 %v916
        %v918 = vpop.xlane.xlu0 %917
        %v921 = vsel %vm666, %v915, 0
        %923 = vmatprep.subr.mxu0 0.0
        %924 = vmatpush1.msra.mxu0 %v835
        %925 = vmatprep.subr.mxu0 0.0
        %926 = vmatpush1.msra.mxu0 0.0
        %927 = vmatprep.subr.mxu0 0.0
        %928 = vmatpush1.msra.mxu0 0.0
        %929 = vmatprep.subr.mxu0 0.0
        %930 = vmatpush1.msra.mxu0 0.0
        %931 = vmatprep.subr.mxu0 0.0
        %932 = vmatpush1.msra.mxu0 0.0
        %933 = vmatprep.subr.mxu0 0.0
        %934 = vmatpush1.msra.mxu0 0.0
        %935 = vmatprep.subr.mxu0 0.0
        %936 = vmatpush1.msra.mxu0 0.0
        %937 = vmatprep.subr.mxu0 0.0
        %938 = vmatpush1.msra.mxu0 0.0
        %939 = vmatprep.subr.mxu0 0.0
        %940 = vmatpush1.msra.mxu0 0.0
        %941 = vmatprep.subr.mxu0 0.0
        %942 = vmatpush1.msra.mxu0 0.0
        %943 = vmatprep.subr.mxu0 0.0
        %944 = vmatpush1.msra.mxu0 0.0
        %945 = vmatprep.subr.mxu0 0.0
        %946 = vmatpush1.msra.mxu0 0.0
        %947 = vmatprep.subr.mxu0 0.0
        %948 = vmatpush1.msra.mxu0 0.0
        %949 = vmatprep.subr.mxu0 0.0
        %950 = vmatpush1.msra.mxu0 0.0
        %951 = vmatprep.subr.mxu0 0.0
        %952 = vmatpush1.msra.mxu0 0.0
        %953 = vmatprep.subr.mxu0 0.0
        %954 = vmatpush1.msra.mxu0 0.0
        %955 = vmatprep.subr.mxu0 0.0
        %956 = vmatpush1.msra.mxu0 0.0
        %957 = vmatprep.subr.mxu0 0.0
        %958 = vmatpush1.msra.mxu0 0.0
        %959 = vmatprep.subr.mxu0 0.0
        %960 = vmatpush1.msra.mxu0 0.0
        %961 = vmatprep.subr.mxu0 0.0
        %962 = vmatpush1.msra.mxu0 0.0
        %963 = vmatprep.subr.mxu0 0.0
        %964 = vmatpush1.msra.mxu0 0.0
        %965 = vmatprep.subr.mxu0 0.0
        %966 = vmatpush1.msra.mxu0 0.0
        %967 = vmatprep.subr.mxu0 0.0
        %968 = vmatpush1.msra.mxu0 0.0
        %969 = vmatprep.subr.mxu0 0.0
        %970 = vmatpush1.msra.mxu0 0.0
        %971 = vmatprep.subr.mxu0 0.0
        %972 = vmatpush1.msra.mxu0 0.0
        %973 = vmatprep.subr.mxu0 0.0
        %974 = vmatpush1.msra.mxu0 0.0
        %975 = vmatprep.subr.mxu0 0.0
        %976 = vmatpush1.msra.mxu0 0.0
        %977 = vmatprep.subr.mxu0 0.0
        %978 = vmatpush1.msra.mxu0 0.0
        %979 = vmatprep.subr.mxu0 0.0
        %980 = vmatpush1.msra.mxu0 0.0
        %981 = vmatprep.subr.mxu0 0.0
        %982 = vmatpush1.msra.mxu0 0.0
        %983 = vmatprep.subr.mxu0 0.0
        %984 = vmatpush1.msra.mxu0 0.0
        %985 = vmatprep.subr.mxu0 0.0
        %986 = vmatpush1.msra.mxu0 0.0
        %987 = vmatprep.mubr.f32.mxu0 0.0
        %988 = vmatmul.mubr.f32.gmra.mrb[0].mxu0 %v921
        %v989 = vpop.f32.mrb[0].mxu0
        %v990 = vadd.f32 0.0, %v989
        %v991 = vpop.f32.mrb[0].mxu0
        %992 = vdwg.mxu0
        %v993 = vrcp.pop %v918
        %v994 = vmul.f32 %v990, %v993
        %996 = vrot.lane.b32.xlu0 %v994, 8
        %v997 = vpop.permute.xlu0 %996
        %vm999 = vcmask 130112
        %1000 = vst.msk [vmem:[#allocation4] sm:$0xff] %vm999, %v997
        %v1001 = vld [vmem:[#allocation3] sm:$0xff]
        %v1002 = vmul.f32 %v1001, 0.35355338
        %1004 = vrot.lane.b32.xlu0 %v1002, 112
        %v1005 = vpop.permute.xlu0 %1004
        %1007 = vrot.lane.b32.xlu0 %v1001, 112
        %v1008 = vpop.permute.xlu0 %1007
        %v1009 = vsel %vm666, %v1005, 0
        %v1011 = vsel %vm666, %v1008, 0
        %1013 = vmatprep.subr.mxu0 0.0
        %1014 = vmatpush1.xpose.msra.mxu0 %v1011
        %1015 = vmatprep.subr.mxu0 0.0
        %1016 = vmatpush1.xpose.msra.mxu0 0.0
        %1017 = vmatprep.subr.mxu0 0.0
        %1018 = vmatpush1.xpose.msra.mxu0 0.0
        %1019 = vmatprep.subr.mxu0 0.0
        %1020 = vmatpush1.xpose.msra.mxu0 0.0
        %1021 = vmatprep.subr.mxu0 0.0
        %1022 = vmatpush1.xpose.msra.mxu0 0.0
        %1023 = vmatprep.subr.mxu0 0.0
        %1024 = vmatpush1.xpose.msra.mxu0 0.0
        %1025 = vmatprep.subr.mxu0 0.0
        %1026 = vmatpush1.xpose.msra.mxu0 0.0
        %1027 = vmatprep.subr.mxu0 0.0
        %1028 = vmatpush1.xpose.msra.mxu0 0.0
        %1029 = vmatprep.subr.mxu0 0.0
        %1030 = vmatpush1.xpose.msra.mxu0 0.0
        %1031 = vmatprep.subr.mxu0 0.0
        %1032 = vmatpush1.xpose.msra.mxu0 0.0
        %1033 = vmatprep.subr.mxu0 0.0
        %1034 = vmatpush1.xpose.msra.mxu0 0.0
        %1035 = vmatprep.subr.mxu0 0.0
        %1036 = vmatpush1.xpose.msra.mxu0 0.0
        %1037 = vmatprep.subr.mxu0 0.0
        %1038 = vmatpush1.xpose.msra.mxu0 0.0
        %1039 = vmatprep.subr.mxu0 0.0
        %1040 = vmatpush1.xpose.msra.mxu0 0.0
        %1041 = vmatprep.subr.mxu0 0.0
        %1042 = vmatpush1.xpose.msra.mxu0 0.0
        %1043 = vmatprep.subr.mxu0 0.0
        %1044 = vmatpush1.xpose.msra.mxu0 0.0
        %1045 = vmatprep.subr.mxu0 0.0
        %1046 = vmatpush1.xpose.msra.mxu0 0.0
        %1047 = vmatprep.subr.mxu0 0.0
        %1048 = vmatpush1.xpose.msra.mxu0 0.0
        %1049 = vmatprep.subr.mxu0 0.0
        %1050 = vmatpush1.xpose.msra.mxu0 0.0
        %1051 = vmatprep.subr.mxu0 0.0
        %1052 = vmatpush1.xpose.msra.mxu0 0.0
        %1053 = vmatprep.subr.mxu0 0.0
        %1054 = vmatpush1.xpose.msra.mxu0 0.0
        %1055 = vmatprep.subr.mxu0 0.0
        %1056 = vmatpush1.xpose.msra.mxu0 0.0
        %1057 = vmatprep.subr.mxu0 0.0
        %1058 = vmatpush1.xpose.msra.mxu0 0.0
        %1059 = vmatprep.subr.mxu0 0.0
        %1060 = vmatpush1.xpose.msra.mxu0 0.0
        %1061 = vmatprep.subr.mxu0 0.0
        %1062 = vmatpush1.xpose.msra.mxu0 0.0
        %1063 = vmatprep.subr.mxu0 0.0
        %1064 = vmatpush1.xpose.msra.mxu0 0.0
        %1065 = vmatprep.subr.mxu0 0.0
        %1066 = vmatpush1.xpose.msra.mxu0 0.0
        %1067 = vmatprep.subr.mxu0 0.0
        %1068 = vmatpush1.xpose.msra.mxu0 0.0
        %1069 = vmatprep.subr.mxu0 0.0
        %1070 = vmatpush1.xpose.msra.mxu0 0.0
        %1071 = vmatprep.subr.mxu0 0.0
        %1072 = vmatpush1.xpose.msra.mxu0 0.0
        %1073 = vmatprep.subr.mxu0 0.0
        %1074 = vmatpush1.xpose.msra.mxu0 0.0
        %1075 = vmatprep.subr.mxu0 0.0
        %1076 = vmatpush1.xpose.msra.mxu0 0.0
        %1077 = vmatprep.mubr.f32.mxu0 0.0
        %1078 = vmatmul.mubr.f32.gmra.mrb[0].mxu0 %v1009
        %v1079 = vpop.f32.mrb[0].mxu0
        %v1080 = vadd.f32 0.0, %v1079
        %v1081 = vpop.f32.mrb[0].mxu0
        %1082 = vdwg.mxu0
        %v1083 = vsel %vm666, %v1080, -inf
        %1084 = vmax.xlane.f32.xlu0 %v1083
        %v1085 = vpop.xlane.xlu0 %1084
        %v1086 = vsub.f32 %v1080, %v1085
        %v1087 = vmul.f32 %v1086, 1.442695
        %v1088 = vpow.pop %v1087
        %v1089 = vsel %vm666, %v1088, 0.0
        %1090 = vadd.xlane.f32.xlu0 %v1089
        %v1091 = vpop.xlane.xlu0 %1090
        %v1094 = vsel %vm666, %v1088, 0
        %1096 = vmatprep.subr.mxu0 0.0
        %1097 = vmatpush1.msra.mxu0 %v1008
        %1098 = vmatprep.subr.mxu0 0.0
        %1099 = vmatpush1.msra.mxu0 0.0
        %1100 = vmatprep.subr.mxu0 0.0
        %1101 = vmatpush1.msra.mxu0 0.0
        %1102 = vmatprep.subr.mxu0 0.0
        %1103 = vmatpush1.msra.mxu0 0.0
        %1104 = vmatprep.subr.mxu0 0.0
        %1105 = vmatpush1.msra.mxu0 0.0
        %1106 = vmatprep.subr.mxu0 0.0
        %1107 = vmatpush1.msra.mxu0 0.0
        %1108 = vmatprep.subr.mxu0 0.0
        %1109 = vmatpush1.msra.mxu0 0.0
        %1110 = vmatprep.subr.mxu0 0.0
        %1111 = vmatpush1.msra.mxu0 0.0
        %1112 = vmatprep.subr.mxu0 0.0
        %1113 = vmatpush1.msra.mxu0 0.0
        %1114 = vmatprep.subr.mxu0 0.0
        %1115 = vmatpush1.msra.mxu0 0.0
        %1116 = vmatprep.subr.mxu0 0.0
        %1117 = vmatpush1.msra.mxu0 0.0
        %1118 = vmatprep.subr.mxu0 0.0
        %1119 = vmatpush1.msra.mxu0 0.0
        %1120 = vmatprep.subr.mxu0 0.0
        %1121 = vmatpush1.msra.mxu0 0.0
        %1122 = vmatprep.subr.mxu0 0.0
        %1123 = vmatpush1.msra.mxu0 0.0
        %1124 = vmatprep.subr.mxu0 0.0
        %1125 = vmatpush1.msra.mxu0 0.0
        %1126 = vmatprep.subr.mxu0 0.0
        %1127 = vmatpush1.msra.mxu0 0.0
        %1128 = vmatprep.subr.mxu0 0.0
        %1129 = vmatpush1.msra.mxu0 0.0
        %1130 = vmatprep.subr.mxu0 0.0
        %1131 = vmatpush1.msra.mxu0 0.0
        %1132 = vmatprep.subr.mxu0 0.0
        %1133 = vmatpush1.msra.mxu0 0.0
        %1134 = vmatprep.subr.mxu0 0.0
        %1135 = vmatpush1.msra.mxu0 0.0
        %1136 = vmatprep.subr.mxu0 0.0
        %1137 = vmatpush1.msra.mxu0 0.0
        %1138 = vmatprep.subr.mxu0 0.0
        %1139 = vmatpush1.msra.mxu0 0.0
        %1140 = vmatprep.subr.mxu0 0.0
        %1141 = vmatpush1.msra.mxu0 0.0
        %1142 = vmatprep.subr.mxu0 0.0
        %1143 = vmatpush1.msra.mxu0 0.0
        %1144 = vmatprep.subr.mxu0 0.0
        %1145 = vmatpush1.msra.mxu0 0.0
        %1146 = vmatprep.subr.mxu0 0.0
        %1147 = vmatpush1.msra.mxu0 0.0
        %1148 = vmatprep.subr.mxu0 0.0
        %1149 = vmatpush1.msra.mxu0 0.0
        %1150 = vmatprep.subr.mxu0 0.0
        %1151 = vmatpush1.msra.mxu0 0.0
        %1152 = vmatprep.subr.mxu0 0.0
        %1153 = vmatpush1.msra.mxu0 0.0
        %1154 = vmatprep.subr.mxu0 0.0
        %1155 = vmatpush1.msra.mxu0 0.0
        %1156 = vmatprep.subr.mxu0 0.0
        %1157 = vmatpush1.msra.mxu0 0.0
        %1158 = vmatprep.subr.mxu0 0.0
        %1159 = vmatpush1.msra.mxu0 0.0
        %1160 = vmatprep.mubr.f32.mxu0 0.0
        %1161 = vmatmul.mubr.f32.gmra.mrb[0].mxu0 %v1094
        %v1162 = vpop.f32.mrb[0].mxu0
        %v1163 = vadd.f32 0.0, %v1162
        %v1164 = vpop.f32.mrb[0].mxu0
        %1165 = vdwg.mxu0
        %v1166 = vrcp.pop %v1091
        %v1167 = vmul.f32 %v1163, %v1166
        %1169 = vrot.lane.b32.xlu0 %v1167, 16
        %v1170 = vpop.permute.xlu0 %1169
        %vm1172 = vcmask 195712
        %1173 = vst.msk [vmem:[#allocation4] sm:$0xff] %vm1172, %v1170
        %v1174 = vld [vmem:[#allocation3] sm:$0xff]
        %v1175 = vmul.f32 %v1174, 0.35355338
        %1177 = vrot.lane.b32.xlu0 %v1175, 104
        %v1178 = vpop.permute.xlu0 %1177
        %1180 = vrot.lane.b32.xlu0 %v1174, 104
        %v1181 = vpop.permute.xlu0 %1180
        %v1182 = vsel %vm666, %v1178, 0
        %v1184 = vsel %vm666, %v1181, 0
        %1186 = vmatprep.subr.mxu0 0.0
        %1187 = vmatpush1.xpose.msra.mxu0 %v1184
        %1188 = vmatprep.subr.mxu0 0.0
        %1189 = vmatpush1.xpose.msra.mxu0 0.0
        %1190 = vmatprep.subr.mxu0 0.0
        %1191 = vmatpush1.xpose.msra.mxu0 0.0
        %1192 = vmatprep.subr.mxu0 0.0
        %1193 = vmatpush1.xpose.msra.mxu0 0.0
        %1194 = vmatprep.subr.mxu0 0.0
        %1195 = vmatpush1.xpose.msra.mxu0 0.0
        %1196 = vmatprep.subr.mxu0 0.0
        %1197 = vmatpush1.xpose.msra.mxu0 0.0
        %1198 = vmatprep.subr.mxu0 0.0
        %1199 = vmatpush1.xpose.msra.mxu0 0.0
        %1200 = vmatprep.subr.mxu0 0.0
        %1201 = vmatpush1.xpose.msra.mxu0 0.0
        %1202 = vmatprep.subr.mxu0 0.0
        %1203 = vmatpush1.xpose.msra.mxu0 0.0
        %1204 = vmatprep.subr.mxu0 0.0
        %1205 = vmatpush1.xpose.msra.mxu0 0.0
        %1206 = vmatprep.subr.mxu0 0.0
        %1207 = vmatpush1.xpose.msra.mxu0 0.0
        %1208 = vmatprep.subr.mxu0 0.0
        %1209 = vmatpush1.xpose.msra.mxu0 0.0
        %1210 = vmatprep.subr.mxu0 0.0
        %1211 = vmatpush1.xpose.msra.mxu0 0.0
        %1212 = vmatprep.subr.mxu0 0.0
        %1213 = vmatpush1.xpose.msra.mxu0 0.0
        %1214 = vmatprep.subr.mxu0 0.0
        %1215 = vmatpush1.xpose.msra.mxu0 0.0
        %1216 = vmatprep.subr.mxu0 0.0
        %1217 = vmatpush1.xpose.msra.mxu0 0.0
        %1218 = vmatprep.subr.mxu0 0.0
        %1219 = vmatpush1.xpose.msra.mxu0 0.0
        %1220 = vmatprep.subr.mxu0 0.0
        %1221 = vmatpush1.xpose.msra.mxu0 0.0
        %1222 = vmatprep.subr.mxu0 0.0
        %1223 = vmatpush1.xpose.msra.mxu0 0.0
        %1224 = vmatprep.subr.mxu0 0.0
        %1225 = vmatpush1.xpose.msra.mxu0 0.0
        %1226 = vmatprep.subr.mxu0 0.0
        %1227 = vmatpush1.xpose.msra.mxu0 0.0
        %1228 = vmatprep.subr.mxu0 0.0
        %1229 = vmatpush1.xpose.msra.mxu0 0.0
        %1230 = vmatprep.subr.mxu0 0.0
        %1231 = vmatpush1.xpose.msra.mxu0 0.0
        %1232 = vmatprep.subr.mxu0 0.0
        %1233 = vmatpush1.xpose.msra.mxu0 0.0
        %1234 = vmatprep.subr.mxu0 0.0
        %1235 = vmatpush1.xpose.msra.mxu0 0.0
        %1236 = vmatprep.subr.mxu0 0.0
        %1237 = vmatpush1.xpose.msra.mxu0 0.0
        %1238 = vmatprep.subr.mxu0 0.0
        %1239 = vmatpush1.xpose.msra.mxu0 0.0
        %1240 = vmatprep.subr.mxu0 0.0
        %1241 = vmatpush1.xpose.msra.mxu0 0.0
        %1242 = vmatprep.subr.mxu0 0.0
        %1243 = vmatpush1.xpose.msra.mxu0 0.0
        %1244 = vmatprep.subr.mxu0 0.0
        %1245 = vmatpush1.xpose.msra.mxu0 0.0
        %1246 = vmatprep.subr.mxu0 0.0
        %1247 = vmatpush1.xpose.msra.mxu0 0.0
        %1248 = vmatprep.subr.mxu0 0.0
        %1249 = vmatpush1.xpose.msra.mxu0 0.0
        %1250 = vmatprep.mubr.f32.mxu0 0.0
        %1251 = vmatmul.mubr.f32.gmra.mrb[0].mxu0 %v1182
        %v1252 = vpop.f32.mrb[0].mxu0
        %v1253 = vadd.f32 0.0, %v1252
        %v1254 = vpop.f32.mrb[0].mxu0
        %1255 = vdwg.mxu0
        %v1256 = vsel %vm666, %v1253, -inf
        %1257 = vmax.xlane.f32.xlu0 %v1256
        %v1258 = vpop.xlane.xlu0 %1257
        %v1259 = vsub.f32 %v1253, %v1258
        %v1260 = vmul.f32 %v1259, 1.442695
        %v1261 = vpow.pop %v1260
        %v1262 = vsel %vm666, %v1261, 0.0
        %1263 = vadd.xlane.f32.xlu0 %v1262
        %v1264 = vpop.xlane.xlu0 %1263
        %v1267 = vsel %vm666, %v1261, 0
        %1269 = vmatprep.subr.mxu0 0.0
        %1270 = vmatpush1.msra.mxu0 %v1181
        %1271 = vmatprep.subr.mxu0 0.0
        %1272 = vmatpush1.msra.mxu0 0.0
        %1273 = vmatprep.subr.mxu0 0.0
        %1274 = vmatpush1.msra.mxu0 0.0
        %1275 = vmatprep.subr.mxu0 0.0
        %1276 = vmatpush1.msra.mxu0 0.0
        %1277 = vmatprep.subr.mxu0 0.0
        %1278 = vmatpush1.msra.mxu0 0.0
        %1279 = vmatprep.subr.mxu0 0.0
        %1280 = vmatpush1.msra.mxu0 0.0
        %1281 = vmatprep.subr.mxu0 0.0
        %1282 = vmatpush1.msra.mxu0 0.0
        %1283 = vmatprep.subr.mxu0 0.0
        %1284 = vmatpush1.msra.mxu0 0.0
        %1285 = vmatprep.subr.mxu0 0.0
        %1286 = vmatpush1.msra.mxu0 0.0
        %1287 = vmatprep.subr.mxu0 0.0
        %1288 = vmatpush1.msra.mxu0 0.0
        %1289 = vmatprep.subr.mxu0 0.0
        %1290 = vmatpush1.msra.mxu0 0.0
        %1291 = vmatprep.subr.mxu0 0.0
        %1292 = vmatpush1.msra.mxu0 0.0
        %1293 = vmatprep.subr.mxu0 0.0
        %1294 = vmatpush1.msra.mxu0 0.0
        %1295 = vmatprep.subr.mxu0 0.0
        %1296 = vmatpush1.msra.mxu0 0.0
        %1297 = vmatprep.subr.mxu0 0.0
        %1298 = vmatpush1.msra.mxu0 0.0
        %1299 = vmatprep.subr.mxu0 0.0
        %1300 = vmatpush1.msra.mxu0 0.0
        %1301 = vmatprep.subr.mxu0 0.0
        %1302 = vmatpush1.msra.mxu0 0.0
        %1303 = vmatprep.subr.mxu0 0.0
        %1304 = vmatpush1.msra.mxu0 0.0
        %1305 = vmatprep.subr.mxu0 0.0
        %1306 = vmatpush1.msra.mxu0 0.0
        %1307 = vmatprep.subr.mxu0 0.0
        %1308 = vmatpush1.msra.mxu0 0.0
        %1309 = vmatprep.subr.mxu0 0.0
        %1310 = vmatpush1.msra.mxu0 0.0
        %1311 = vmatprep.subr.mxu0 0.0
        %1312 = vmatpush1.msra.mxu0 0.0
        %1313 = vmatprep.subr.mxu0 0.0
        %1314 = vmatpush1.msra.mxu0 0.0
        %1315 = vmatprep.subr.mxu0 0.0
        %1316 = vmatpush1.msra.mxu0 0.0
        %1317 = vmatprep.subr.mxu0 0.0
        %1318 = vmatpush1.msra.mxu0 0.0
        %1319 = vmatprep.subr.mxu0 0.0
        %1320 = vmatpush1.msra.mxu0 0.0
        %1321 = vmatprep.subr.mxu0 0.0
        %1322 = vmatpush1.msra.mxu0 0.0
        %1323 = vmatprep.subr.mxu0 0.0
        %1324 = vmatpush1.msra.mxu0 0.0
        %1325 = vmatprep.subr.mxu0 0.0
        %1326 = vmatpush1.msra.mxu0 0.0
        %1327 = vmatprep.subr.mxu0 0.0
        %1328 = vmatpush1.msra.mxu0 0.0
        %1329 = vmatprep.subr.mxu0 0.0
        %1330 = vmatpush1.msra.mxu0 0.0
        %1331 = vmatprep.subr.mxu0 0.0
        %1332 = vmatpush1.msra.mxu0 0.0
        %1333 = vmatprep.mubr.f32.mxu0 0.0
        %1334 = vmatmul.mubr.f32.gmra.mrb[0].mxu0 %v1267
        %v1335 = vpop.f32.mrb[0].mxu0
        %v1336 = vadd.f32 0.0, %v1335
        %v1337 = vpop.f32.mrb[0].mxu0
        %1338 = vdwg.mxu0
        %v1339 = vrcp.pop %v1264
        %v1340 = vmul.f32 %v1336, %v1339
        %1342 = vrot.lane.b32.xlu0 %v1340, 24
        %v1343 = vpop.permute.xlu0 %1342
        %vm1345 = vcmask 261312
        %1346 = vst.msk [vmem:[#allocation4] sm:$0xff] %vm1345, %v1343
        %v1347 = vld [vmem:[#allocation4] sm:$0xff]
        %v1348 = vld [vmem:[%s458] sm:$0xff]
        %v1349 = vld [vmem:[%s458 + $0x8] sm:$0xff]
        %v1350 = vld [vmem:[%s458 + $0x10] sm:$0xff]
        %v1351 = vld [vmem:[%s458 + $0x18] sm:$0xff]
        %v1352 = vld [vmem:[%s540] sm:$0x1]
        %v1354 = vlaneseq
        %v1355 = vshrl.u32 %v1354, 7
        %v1356 = vsub.s32 0, %v1355
        %v1357 = vrot.slane %v1352, %v1356
        %v1360 = vsel %vm557, %v1347, 0
        %1362 = vmatprep.subr.mxu0 0.0
        %1363 = vmatpush1.msra.mxu0 %v1348
        %1364 = vmatprep.subr.mxu0 0.0
        %1365 = vmatpush1.msra.mxu0 %v1349
        %1366 = vmatprep.subr.mxu0 0.0
        %1367 = vmatpush1.msra.mxu0 %v1350
        %1368 = vmatprep.subr.mxu0 0.0
        %1369 = vmatpush1.msra.mxu0 %v1351
        %1370 = vmatprep.subr.mxu0 0.0
        %1371 = vmatpush1.msra.mxu0 0.0
        %1372 = vmatprep.subr.mxu0 0.0
        %1373 = vmatpush1.msra.mxu0 0.0
        %1374 = vmatprep.subr.mxu0 0.0
        %1375 = vmatpush1.msra.mxu0 0.0
        %1376 = vmatprep.subr.mxu0 0.0
        %1377 = vmatpush1.msra.mxu0 0.0
        %1378 = vmatprep.subr.mxu0 0.0
        %1379 = vmatpush1.msra.mxu0 0.0
        %1380 = vmatprep.subr.mxu0 0.0
        %1381 = vmatpush1.msra.mxu0 0.0
        %1382 = vmatprep.subr.mxu0 0.0
        %1383 = vmatpush1.msra.mxu0 0.0
        %1384 = vmatprep.subr.mxu0 0.0
        %1385 = vmatpush1.msra.mxu0 0.0
        %1386 = vmatprep.subr.mxu0 0.0
        %1387 = vmatpush1.msra.mxu0 0.0
        %1388 = vmatprep.subr.mxu0 0.0
        %1389 = vmatpush1.msra.mxu0 0.0
        %1390 = vmatprep.subr.mxu0 0.0
        %1391 = vmatpush1.msra.mxu0 0.0
        %1392 = vmatprep.subr.mxu0 0.0
        %1393 = vmatpush1.msra.mxu0 0.0
        %1394 = vmatprep.subr.mxu0 0.0
        %1395 = vmatpush1.msra.mxu0 0.0
        %1396 = vmatprep.subr.mxu0 0.0
        %1397 = vmatpush1.msra.mxu0 0.0
        %1398 = vmatprep.subr.mxu0 0.0
        %1399 = vmatpush1.msra.mxu0 0.0
        %1400 = vmatprep.subr.mxu0 0.0
        %1401 = vmatpush1.msra.mxu0 0.0
        %1402 = vmatprep.subr.mxu0 0.0
        %1403 = vmatpush1.msra.mxu0 0.0
        %1404 = vmatprep.subr.mxu0 0.0
        %1405 = vmatpush1.msra.mxu0 0.0
        %1406 = vmatprep.subr.mxu0 0.0
        %1407 = vmatpush1.msra.mxu0 0.0
        %1408 = vmatprep.subr.mxu0 0.0
        %1409 = vmatpush1.msra.mxu0 0.0
        %1410 = vmatprep.subr.mxu0 0.0
        %1411 = vmatpush1.msra.mxu0 0.0
        %1412 = vmatprep.subr.mxu0 0.0
        %1413 = vmatpush1.msra.mxu0 0.0
        %1414 = vmatprep.subr.mxu0 0.0
        %1415 = vmatpush1.msra.mxu0 0.0
        %1416 = vmatprep.subr.mxu0 0.0
        %1417 = vmatpush1.msra.mxu0 0.0
        %1418 = vmatprep.subr.mxu0 0.0
        %1419 = vmatpush1.msra.mxu0 0.0
        %1420 = vmatprep.subr.mxu0 0.0
        %1421 = vmatpush1.msra.mxu0 0.0
        %1422 = vmatprep.subr.mxu0 0.0
        %1423 = vmatpush1.msra.mxu0 0.0
        %1424 = vmatprep.subr.mxu0 0.0
        %1425 = vmatpush1.msra.mxu0 0.0
        %1426 = vmatprep.mubr.f32.mxu0 0.0
        %1427 = vmatmul.mubr.f32.gmra.mrb[0].mxu0 %v1360
        %v1428 = vpop.f32.mrb[0].mxu0
        %v1429 = vadd.f32 %v1357, %v1428
        %v1430 = vpop.f32.mrb[0].mxu0
        %1431 = vdwg.mxu0
        %v1432 = vadd.f32 %v1429, %v554
        %v1433 = vld [vmem:[%s543] sm:$0x1]
        %v1434 = vld [vmem:[%s546] sm:$0x1]
        %v1435 = vsel %vm557, %v1432, 0.0
        %1436 = vadd.xlane.f32.xlu0 %v1435
        %v1437 = vpop.xlane.xlu0 %1436
        %v1438 = vmul.f32 %v1437, %v561
        %v1439 = vsub.f32 %v1432, %v1438
        %v1440 = vmul.f32 %v1439, %v1439
        %v1441 = vsel %vm557, %v1440, 0.0
        %1442 = vadd.xlane.f32.xlu0 %v1441
        %v1443 = vpop.xlane.xlu0 %1442
        %v1444 = vmul.f32 %v1443, %v561
        %v1445 = vadd.f32 %v1444, 1e-05
        %v1446 = vrsqrt.pop %v1445
        %v1447 = vmul.f32 %v1439, %v1446
        %v1449 = vlaneseq
        %v1450 = vshrl.u32 %v1449, 7
        %v1451 = vsub.s32 0, %v1450
        %v1452 = vrot.slane %v1433, %v1451
        %v1454 = vmul.f32 %v1447, %v1452
        %v1456 = vlaneseq
        %v1457 = vshrl.u32 %v1456, 7
        %v1458 = vsub.s32 0, %v1457
        %v1459 = vrot.slane %v1434, %v1458
        %v1461 = vadd.f32 %v1454, %v1459
        %v1462 = vld [vmem:[%s467] sm:$0xff]
        %v1463 = vld [vmem:[%s467 + $0x8] sm:$0xff]
        %v1464 = vld [vmem:[%s467 + $0x10] sm:$0xff]
        %v1465 = vld [vmem:[%s467 + $0x18] sm:$0xff]
        %v1467 = vsel %vm557, %v1461, 0
        %v1470 = vsel %vm557, %v1462, 0
        %v1473 = vsel %vm557, %v1463, 0
        %v1476 = vsel %vm557, %v1464, 0
        %v1479 = vsel %vm557, %v1465, 0
        %1481 = vmatprep.subr.mxu0 0.0
        %1482 = vmatpush1.xpose.msra.mxu0 %v1470
        %1483 = vmatprep.subr.mxu0 0.0
        %1484 = vmatpush1.xpose.msra.mxu0 %v1473
        %1485 = vmatprep.subr.mxu0 0.0
        %1486 = vmatpush1.xpose.msra.mxu0 %v1476
        %1487 = vmatprep.subr.mxu0 0.0
        %1488 = vmatpush1.xpose.msra.mxu0 %v1479
        %1489 = vmatprep.subr.mxu0 0.0
        %1490 = vmatpush1.xpose.msra.mxu0 0.0
        %1491 = vmatprep.subr.mxu0 0.0
        %1492 = vmatpush1.xpose.msra.mxu0 0.0
        %1493 = vmatprep.subr.mxu0 0.0
        %1494 = vmatpush1.xpose.msra.mxu0 0.0
        %1495 = vmatprep.subr.mxu0 0.0
        %1496 = vmatpush1.xpose.msra.mxu0 0.0
        %1497 = vmatprep.subr.mxu0 0.0
        %1498 = vmatpush1.xpose.msra.mxu0 0.0
        %1499 = vmatprep.subr.mxu0 0.0
        %1500 = vmatpush1.xpose.msra.mxu0 0.0
        %1501 = vmatprep.subr.mxu0 0.0
        %1502 = vmatpush1.xpose.msra.mxu0 0.0
        %1503 = vmatprep.subr.mxu0 0.0
        %1504 = vmatpush1.xpose.msra.mxu0 0.0
        %1505 = vmatprep.subr.mxu0 0.0
        %1506 = vmatpush1.xpose.msra.mxu0 0.0
        %1507 = vmatprep.subr.mxu0 0.0
        %1508 = vmatpush1.xpose.msra.mxu0 0.0
        %1509 = vmatprep.subr.mxu0 0.0
        %1510 = vmatpush1.xpose.msra.mxu0 0.0
        %1511 = vmatprep.subr.mxu0 0.0
        %1512 = vmatpush1.xpose.msra.mxu0 0.0
        %1513 = vmatprep.subr.mxu0 0.0
        %1514 = vmatpush1.xpose.msra.mxu0 0.0
        %1515 = vmatprep.subr.mxu0 0.0
        %1516 = vmatpush1.xpose.msra.mxu0 0.0
        %1517 = vmatprep.subr.mxu0 0.0
        %1518 = vmatpush1.xpose.msra.mxu0 0.0
        %1519 = vmatprep.subr.mxu0 0.0
        %1520 = vmatpush1.xpose.msra.mxu0 0.0
        %1521 = vmatprep.subr.mxu0 0.0
        %1522 = vmatpush1.xpose.msra.mxu0 0.0
        %1523 = vmatprep.subr.mxu0 0.0
        %1524 = vmatpush1.xpose.msra.mxu0 0.0
        %1525 = vmatprep.subr.mxu0 0.0
        %1526 = vmatpush1.xpose.msra.mxu0 0.0
        %1527 = vmatprep.subr.mxu0 0.0
        %1528 = vmatpush1.xpose.msra.mxu0 0.0
        %1529 = vmatprep.subr.mxu0 0.0
        %1530 = vmatpush1.xpose.msra.mxu0 0.0
        %1531 = vmatprep.subr.mxu0 0.0
        %1532 = vmatpush1.xpose.msra.mxu0 0.0
        %1533 = vmatprep.subr.mxu0 0.0
        %1534 = vmatpush1.xpose.msra.mxu0 0.0
        %1535 = vmatprep.subr.mxu0 0.0
        %1536 = vmatpush1.xpose.msra.mxu0 0.0
        %1537 = vmatprep.subr.mxu0 0.0
        %1538 = vmatpush1.xpose.msra.mxu0 0.0
        %1539 = vmatprep.subr.mxu0 0.0
        %1540 = vmatpush1.xpose.msra.mxu0 0.0
        %1541 = vmatprep.subr.mxu0 0.0
        %1542 = vmatpush1.xpose.msra.mxu0 0.0
        %1543 = vmatprep.subr.mxu0 0.0
        %1544 = vmatpush1.xpose.msra.mxu0 0.0
        %1545 = vmatprep.mubr.f32.mxu0 0.0
        %1546 = vmatmul.mubr.f32.gmra.mrb[0].mxu0 %v1467
        %v1547 = vpop.f32.mrb[0].mxu0
        %v1548 = vadd.f32 0.0, %v1547
        %v1549 = vpop.f32.mrb[0].mxu0
        %1550 = vdwg.mxu0
        %v1551 = vsub.f32 %v1461, %v1548
        %v1553 = vsel %vm557, %v1551, 0
        %1555 = vmatprep.subr.mxu0 0.0
        %1556 = vmatpush1.msra.mxu0 %v1462
        %1557 = vmatprep.subr.mxu0 0.0
        %1558 = vmatpush1.msra.mxu0 %v1463
        %1559 = vmatprep.subr.mxu0 0.0
        %1560 = vmatpush1.msra.mxu0 %v1464
        %1561 = vmatprep.subr.mxu0 0.0
        %1562 = vmatpush1.msra.mxu0 %v1465
        %1563 = vmatprep.subr.mxu0 0.0
        %1564 = vmatpush1.msra.mxu0 0.0
        %1565 = vmatprep.subr.mxu0 0.0
        %1566 = vmatpush1.msra.mxu0 0.0
        %1567 = vmatprep.subr.mxu0 0.0
        %1568 = vmatpush1.msra.mxu0 0.0
        %1569 = vmatprep.subr.mxu0 0.0
        %1570 = vmatpush1.msra.mxu0 0.0
        %1571 = vmatprep.subr.mxu0 0.0
        %1572 = vmatpush1.msra.mxu0 0.0
        %1573 = vmatprep.subr.mxu0 0.0
        %1574 = vmatpush1.msra.mxu0 0.0
        %1575 = vmatprep.subr.mxu0 0.0
        %1576 = vmatpush1.msra.mxu0 0.0
        %1577 = vmatprep.subr.mxu0 0.0
        %1578 = vmatpush1.msra.mxu0 0.0
        %1579 = vmatprep.subr.mxu0 0.0
        %1580 = vmatpush1.msra.mxu0 0.0
        %1581 = vmatprep.subr.mxu0 0.0
        %1582 = vmatpush1.msra.mxu0 0.0
        %1583 = vmatprep.subr.mxu0 0.0
        %1584 = vmatpush1.msra.mxu0 0.0
        %1585 = vmatprep.subr.mxu0 0.0
        %1586 = vmatpush1.msra.mxu0 0.0
        %1587 = vmatprep.subr.mxu0 0.0
        %1588 = vmatpush1.msra.mxu0 0.0
        %1589 = vmatprep.subr.mxu0 0.0
        %1590 = vmatpush1.msra.mxu0 0.0
        %1591 = vmatprep.subr.mxu0 0.0
        %1592 = vmatpush1.msra.mxu0 0.0
        %1593 = vmatprep.subr.mxu0 0.0
        %1594 = vmatpush1.msra.mxu0 0.0
        %1595 = vmatprep.subr.mxu0 0.0
        %1596 = vmatpush1.msra.mxu0 0.0
        %1597 = vmatprep.subr.mxu0 0.0
        %1598 = vmatpush1.msra.mxu0 0.0
        %1599 = vmatprep.subr.mxu0 0.0
        %1600 = vmatpush1.msra.mxu0 0.0
        %1601 = vmatprep.subr.mxu0 0.0
        %1602 = vmatpush1.msra.mxu0 0.0
        %1603 = vmatprep.subr.mxu0 0.0
        %1604 = vmatpush1.msra.mxu0 0.0
        %1605 = vmatprep.subr.mxu0 0.0
        %1606 = vmatpush1.msra.mxu0 0.0
        %1607 = vmatprep.subr.mxu0 0.0
        %1608 = vmatpush1.msra.mxu0 0.0
        %1609 = vmatprep.subr.mxu0 0.0
        %1610 = vmatpush1.msra.mxu0 0.0
        %1611 = vmatprep.subr.mxu0 0.0
        %1612 = vmatpush1.msra.mxu0 0.0
        %1613 = vmatprep.subr.mxu0 0.0
        %1614 = vmatpush1.msra.mxu0 0.0
        %1615 = vmatprep.subr.mxu0 0.0
        %1616 = vmatpush1.msra.mxu0 0.0
        %1617 = vmatprep.subr.mxu0 0.0
        %1618 = vmatpush1.msra.mxu0 0.0
        %1619 = vmatprep.mubr.f32.mxu0 0.0
        %1620 = vmatmul.mubr.f32.gmra.mrb[0].mxu0 %v1553
        %v1621 = vpop.f32.mrb[0].mxu0
        %v1622 = vadd.f32 0.0, %v1621
        %v1623 = vpop.f32.mrb[0].mxu0
        %1624 = vdwg.mxu0
        %v1625 = vmul.f32 %v1622, 0.1
        %v1626 = vsub.f32 %v1625, 0.01
        %v1627 = vadd.f32 %v1461, %v1626
        %v1628 = vmax.f32 %v1627, 0.0
        %v1629 = vadd.f32 %v1628, %v1432
        %1630 = vst.msk [vmem:[#allocation2] sm:$0xff] %vm557, %v1629
        %p1631 = scmp.eq.s32.totalorder %s37, 1
        // Predicated region
        $region77: #{tpu_custom_call.1} parent=55 // pred_check
          %p1632 = pneg %p1631
        $region78: #{tpu_custom_call.1} parent=55 // pred_check_branch
          %1634 = sbr.rel (%p1632) target = $region80
        $region79: #{tpu_custom_call.1} parent=55 // pred_region
          %1635 = vst.msk [vmem:[%s531] sm:$0xff] %vm557, %v1629
        $region80: #{tpu_custom_call.1} parent=55 // pred_fallthru
          _
        %s1636 = sand.u32 %s286, 1
        %s1637 = scalar_lea.sflag [#allocation7], %s1636
        %s1638 = sand.u32 %s286, 1
        %s1639 = smul.addr %s1638, 8
        %s1640 = scalar_lea.vmem [#allocation13], %s1639
        // Predicated region
        $region81: #{tpu_custom_call.1} parent=55 // pred_check
          %p1641 = pneg %p296
        $region82: #{tpu_custom_call.1} parent=55 // pred_check_branch
          %1643 = sbr.rel (%p1641) target = $region84
        $region83: #{tpu_custom_call.1} parent=55 // pred_region
          %s1645 = ssub.s32 128, 128
          %1646 = vsyncadd %s1637, %s1645
          %s1647 = smul.addr %s36, 128
          %s1648 = scalar_lea.hbm %s9, %s1647
          %s1650 = sshll.u32 %s1640, 4
          %s1651 = int_to_ptr.vmem [resolvable:$true] %s1650
          %1653 = dma.vmem_to_hbm [thread:$0]  %s1651, 128, %s1648, %s1637
        $region84: #{tpu_custom_call.1} parent=55 // pred_fallthru
          _
      $region56: #{tpu_custom_call.1} parent=5 // pred_fallthru
        _
      %p1654 = scmp.le.s32.totalorder 2, %s27
      // Predicated region
      $region85: #{tpu_custom_call.1} parent=5 // pred_check
        %p1655 = pneg %p1654
      $region86: #{tpu_custom_call.1} parent=5 // pred_check_branch
        %1657 = sbr.rel (%p1655) target = $region88
      $region87: #{tpu_custom_call.1} parent=5 // pred_region
        %s1658 = ssub.s32 %s27, 2
        // Predicated region
        $region89: #{tpu_custom_call.1} parent=87 // pred_check
          %p1659 = pneg %p302
        $region90: #{tpu_custom_call.1} parent=87 // pred_check_branch
          %1661 = sbr.rel (%p1659) target = $region92
        $region91: #{tpu_custom_call.1} parent=87 // pred_region
          %s1662 = sand.u32 %s287, 1
          %s1663 = scalar_lea.sflag [#allocation7], %s1662
          %s1664 = sand.u32 %s287, 1
          %s1665 = smul.addr %s1664, 8
          %s1666 = scalar_lea.vmem [#allocation13], %s1665
          %1667 = dma.done %s1663, 128
        $region92: #{tpu_custom_call.1} parent=87 // pred_fallthru
          _
      $region88: #{tpu_custom_call.1} parent=5 // pred_fallthru
        _
    $region6: #{tpu_custom_call.1} parent=1 // loop_footer
      %s31 = sadd.s32 1, %s27
    $region7: #{tpu_custom_call.1} parent=1 // loop_footer_branch
      %26 = sbr.rel target = $region3
    $region8: #{tpu_custom_call.1} parent=1 // loop_exit
      _
    %1668 = vsyncpa [#allocation6], 1
    %s1669 = scalar_lea.sflag [#allocation6], 1
    %1670 = vsyncpa %s1669, 1
    %1671 = vsyncpa [#allocation9], 1
    %s1672 = scalar_lea.sflag [#allocation9], 1
    %1673 = vsyncpa %s1672, 1
    %1674 = vsyncpa [#allocation12], 1
    %s1675 = scalar_lea.sflag [#allocation12], 1
    %1676 = vsyncpa %s1675, 1
    %1677 = vsyncpa [#allocation7], 1
    %s1678 = scalar_lea.sflag [#allocation7], 1
    %1679 = vsyncpa %s1678, 1

</llo_original>
